<compile_context>
chip_gen: v6e
topology: v6e:2x2x1
jax: 0.10.0
libtpu: 0.0.40
codegen_flags: <defaults>
</compile_context>

<pallas_src>
import functools
import math

import numpy as np
import jax
import jax.numpy as jnp
from jax.experimental import pallas as pl
from jax.experimental.pallas import tpu as pltpu


# --------------------------- deterministic parameters ---------------------------

def _hann_window(win_length: int) -> np.ndarray:
    n = np.arange(win_length, dtype=np.float64)
    return 0.5 - 0.5 * np.cos(2.0 * np.pi * n / win_length)   # periodic Hann


def _dft_matrices(n_fft: int, window: np.ndarray):
    # One-sided DFT real/imag projection matrices with the window folded in.
    n_freqs = n_fft // 2 + 1
    k = np.arange(n_fft, dtype=np.float64)[:, None]
    f = np.arange(n_freqs, dtype=np.float64)[None, :]
    ang = 2.0 * np.pi * k * f / n_fft
    cos_m = np.cos(ang) * window[:, None]
    sin_m = -np.sin(ang) * window[:, None]
    return cos_m.astype(np.float32), sin_m.astype(np.float32)


def _mel_fbanks(n_freqs: int, f_min: float, f_max: float, n_mels: int, sample_rate: int):
    # torchaudio.functional.melscale_fbanks, mel_scale='htk', norm=None
    def hz_to_mel(f):
        return 2595.0 * np.log10(1.0 + f / 700.0)

    def mel_to_hz(m):
        return 700.0 * (10.0 ** (m / 2595.0) - 1.0)

    all_freqs = np.linspace(0.0, sample_rate / 2.0, n_freqs)
    m_pts = np.linspace(hz_to_mel(f_min), hz_to_mel(f_max), n_mels + 2)
    f_pts = mel_to_hz(m_pts)
    f_diff = f_pts[1:] - f_pts[:-1]                       # (n_mels + 1,)
    slopes = f_pts[None, :] - all_freqs[:, None]          # (n_freqs, n_mels + 2)
    down = -slopes[:, :-2] / f_diff[:-1]
    up = slopes[:, 2:] / f_diff[1:]
    fb = np.clip(np.minimum(down, up), 0.0, None)
    return fb.astype(np.float32)                          # (n_freqs, n_mels)


def _create_dct(n_mfcc: int, n_mels: int):
    # torchaudio.functional.create_dct with norm='ortho'
    n = np.arange(n_mels, dtype=np.float64)[None, :]
    k = np.arange(n_mfcc, dtype=np.float64)[:, None]
    dct = np.cos(np.pi / n_mels * (n + 0.5) * k)          # (n_mfcc, n_mels)
    dct[0] *= 1.0 / math.sqrt(2.0)
    dct *= math.sqrt(2.0 / n_mels)
    return dct.T.astype(np.float32)                       # (n_mels, n_mfcc)


def _bilinear_time_matrix(out_dim: int, in_dim: int):
    # F.interpolate(..., mode='bilinear', align_corners=False) restricted to the
    # time axis (the n_mfcc axis keeps its size -> identity there).
    W = np.zeros((out_dim, in_dim), dtype=np.float32)
    scale = in_dim / out_dim
    for i in range(out_dim):
        src = max((i + 0.5) * scale - 0.5, 0.0)
        i0 = min(int(np.floor(src)), in_dim - 1)
        i1 = min(i0 + 1, in_dim - 1)
        lam = min(max(src - i0, 0.0), 1.0)
        W[i, i0] += 1.0 - lam
        W[i, i1] += lam
    return W


def _round_up(x: int, m: int) -> int:
    return ((x + m - 1) // m) * m


def _device_defaults():
    """(tile_frames, vmem_limit_bytes) per TPU generation."""
    kind = ""
    try:
        kind = jax.devices()[0].device_kind.lower()
    except Exception:
        pass
    if "v6" in kind or "trillium" in kind:
        # 128 MiB physical VMEM; big tiles amortize the ~0.35us/step overhead.
        return 512, 96 * 1024 * 1024
    if "v5" in kind:
        # v5e/v5p: 128 MiB physical VMEM, 4x128^2 MXU -> 256 rows is plenty.
        return 256, 64 * 1024 * 1024
    # v7x (64 MiB per TC) and unknown generations: stay conservative.
    return 256, 40 * 1024 * 1024


# --------------------------- cached kernel builder ----------------------------

@functools.lru_cache(maxsize=None)
def _build_mfcc_fn(batch, time, sample_rate, n_mfcc, out_dim, win_length,
                   hop_length, n_fft, n_mels, tile_frames, vmem_limit,
                   use_bf16_dft, use_bf16_mel):
    pad = n_fft // 2
    n_freqs = n_fft // 2 + 1
    n_frames = 1 + (time + 2 * pad - n_fft) // hop_length

    # ---------------------------------- tiling ---------------------------------
    tile_f = min(tile_frames, _round_up(n_frames, 16))
    n_frames_pad = _round_up(n_frames, tile_f)
    m_pad = batch * n_frames_pad
    tiles_per_batch = n_frames_pad // tile_f
    num_row_tiles = m_pad // tile_f
    # Packed fused-DFT width: cos bins in lanes [0, n_freqs), sin bins in
    # [n_freqs, 2*n_freqs), zero padding only up to the next 128-lane multiple.
    fused_w = _round_up(2 * n_freqs, 128)
    n_mfcc_pad = _round_up(n_mfcc, 128)

    # ---- deterministic parameters, built once per config, cached on device ----
    window = _hann_window(win_length)
    if win_length < n_fft:
        lp = (n_fft - win_length) // 2
        window = np.pad(window, (lp, n_fft - win_length - lp))
    cos_m, sin_m = _dft_matrices(n_fft, window)             # (n_fft, n_freqs) each

    dft_np = np.zeros((n_fft, fused_w), np.float32)
    dft_np[:, :n_freqs] = cos_m
    dft_np[:, n_freqs:2 * n_freqs] = sin_m

    # Mel filterbank rows duplicated onto the packed cos/sin lanes:
    #   mel = sum_f fb[f] * (re_f^2 + im_f^2) = (frames @ DFT)^2 @ FB_packed
    fb = _mel_fbanks(n_freqs, 0.0, sample_rate / 2.0, n_mels, sample_rate)
    fb_np = np.zeros((fused_w, n_mels), np.float32)
    fb_np[:n_freqs] = fb
    fb_np[n_freqs:2 * n_freqs] = fb

    dct_np = np.zeros((n_mels, n_mfcc_pad), np.float32)
    dct_np[:, :n_mfcc] = _create_dct(n_mfcc, n_mels)

    w_np = np.zeros((out_dim, n_frames_pad), np.float32)
    w_np[:, :n_frames] = _bilinear_time_matrix(out_dim, n_frames)

    in_dtype = jnp.bfloat16 if use_bf16_dft else jnp.float32
    mel_dtype = jnp.bfloat16 if use_bf16_mel else jnp.float32
    dft_m = jnp.asarray(dft_np).astype(in_dtype)
    fb_m = jnp.asarray(fb_np)
    dct_m = jnp.asarray(dct_np)
    w_m = jnp.asarray(w_np)

    # ------------------------- stage 1: frames -> mel -------------------------
    def mel_kernel(frames_ref, dft_ref, fb_ref, mel_ref, tmax_ref):
        # Single packed [cos|sin] matmul; M = tile_f rows (batch collapsed).
        y = jnp.dot(frames_ref[...], dft_ref[...],
                    preferred_element_type=jnp.float32)       # (tile_f, fused_w)
        power = y * y                                         # Spectrogram(power=2)
        mel = jnp.dot(power, fb_ref[...],
                      preferred_element_type=jnp.float32)     # (tile_f, n_mels)
        mel_ref[...] = mel.astype(mel_ref.dtype)
        # Per-tile row-max (tiny output) -> per-batch top_db floor without an
        # extra HBM pass over the whole mel array.
        tmax_ref[...] = jnp.max(mel, axis=0, keepdims=True)[None]

    mel_call = pl.pallas_call(
        mel_kernel,
        out_shape=(
            jax.ShapeDtypeStruct((m_pad, n_mels), mel_dtype),
            jax.ShapeDtypeStruct((num_row_tiles, 1, n_mels), jnp.float32),
        ),
        grid=(num_row_tiles,),
        in_specs=[
            pl.BlockSpec((tile_f, n_fft), lambda i: (i, 0)),
            # Whole-array VMEM operands: resident for the full kernel, single
            # buffered (no 2x double-buffer VMEM for the constant weights).
            pl.BlockSpec(memory_space=pltpu.MemorySpace.VMEM),   # DFT
            pl.BlockSpec(memory_space=pltpu.MemorySpace.VMEM),   # mel filterbank
        ],
        out_specs=(
            pl.BlockSpec((tile_f, n_mels), lambda i: (i, 0)),
            pl.BlockSpec((1, 1, n_mels), lambda i: (i, 0, 0)),
        ),
        compiler_params=pltpu.CompilerParams(
            dimension_semantics=("parallel",),                   # megacore
            vmem_limit_bytes=vmem_limit,
        ),
    )

    # ---------------- stage 2: dB clamp -> DCT -> time resize ----------------
    def mfcc_kernel(floor_ref, mel_ref, dct_ref, w_ref, out_ref):
        @pl.when(pl.program_id(1) == 0)
        def _():
            out_ref[...] = jnp.zeros_like(out_ref)

        b = pl.program_id(0)
        # AmplitudeToDB('power', top_db=80): db_multiplier = log10(max(amin,1)) = 0.
        db = 10.0 * jnp.log10(jnp.maximum(mel_ref[...].astype(jnp.float32), 1e-10))
        db = jnp.maximum(db, floor_ref[b])                    # per-batch top_db clamp
        # DCT-II (ortho): plain 2-D MXU dot, M = tile_f.
        mfcc = jnp.dot(db, dct_ref[...],
                       preferred_element_type=jnp.float32)    # (tile_f, n_mfcc_pad)
        # Bilinear time resize, accumulated tile-by-tile into the per-batch
        # resident output (collapsed 2-D dot instead of a batched einsum).
        out_ref[...] += jnp.dot(w_ref[...], mfcc,
                                preferred_element_type=jnp.float32)

    mfcc_call = pl.pallas_call(
        mfcc_kernel,
        out_shape=jax.ShapeDtypeStruct((batch, out_dim, n_mfcc_pad), jnp.float32),
        grid=(batch, tiles_per_batch),
        in_specs=[
            pl.BlockSpec(memory_space=pltpu.MemorySpace.SMEM),          # per-batch dB floor
            pl.BlockSpec((None, tile_f, n_mels), lambda b, f: (b, f, 0)),
            pl.BlockSpec(memory_space=pltpu.MemorySpace.VMEM),          # DCT (resident)
            pl.BlockSpec((out_dim, tile_f), lambda b, f: (0, f)),
        ],
        out_specs=pl.BlockSpec((None, out_dim, n_mfcc_pad), lambda b, f: (b, 0, 0)),
        compiler_params=pltpu.CompilerParams(
            dimension_semantics=("parallel", "arbitrary"),    # batch parallel (v7x megacore)
            vmem_limit_bytes=vmem_limit,
        ),
    )

    @jax.jit
    def forward(x):
        # center=True, pad_mode='reflect' (torch.stft). Cast to the matmul input
        # dtype immediately so all framing glue moves half the bytes (bf16 path).
        xp = jnp.pad(x, ((0, 0), (pad, pad)), mode="reflect").astype(in_dtype)
        if n_fft == 2 * hop_length:
            # No-gather framing: frame t = [block_t | block_{t+1}] of hop-sized blocks.
            # TODO(synk): a fully in-kernel framing path (two half-K dots on the raw
            # block array) would avoid materializing the 2x-duplicated frames array.
            blocks = xp[:, :(n_frames + 1) * hop_length]
            blocks = blocks.reshape(batch, n_frames + 1, hop_length)
            frames = jnp.concatenate([blocks[:, :-1, :], blocks[:, 1:, :]], axis=-1)
        else:
            # Gather fallback for hop != n_fft // 2 (correct, but an XLA gather).
            idx = np.arange(n_frames)[:, None] * hop_length + np.arange(n_fft)[None, :]
            frames = xp[:, idx]
        frames = jnp.pad(frames, ((0, 0), (0, n_frames_pad - n_frames), (0, 0)))
        frames_flat = frames.reshape(m_pad, n_fft)

        mel_flat, tmax = mel_call(frames_flat, dft_m, fb_m)

        # Per-batch top_db floor from the tiny per-tile max output (mel >= 0, and
        # zero-padded rows are exactly 0, so padding never changes the max).
        gmax = jnp.max(tmax.reshape(batch, -1), axis=1)            # (batch,)
        floor = (10.0 * jnp.log10(jnp.maximum(gmax, 1e-10)) - 80.0).astype(jnp.float32)

        mel3 = mel_flat.reshape(batch, n_frames_pad, n_mels)
        out_pad = mfcc_call(floor, mel3, dct_m, w_m)               # (B, out_dim, n_mfcc_pad)
        return out_pad[:, :, :n_mfcc]

    return forward


# --------------------------------- wrapper ----------------------------------

def mfcc_extractor(x, *, sample_rate, n_feature, out_dim, win_length,
                   hop_length=None, n_fft=None, n_mels=128,
                   tile_frames=None, vmem_limit=None,
                   use_bf16_dft=True, use_bf16_mel=False):
    """x: (batch, time) float32  ->  (batch, out_dim, n_feature) float32.

    tile_frames / vmem_limit default per TPU generation (v6e: 512/96MiB,
    v5e/v5p: 256/64MiB, v7x & unknown: 256/40MiB).
    use_bf16_dft: bf16 operands for the dominant DFT matmul (f32 accumulate).
    use_bf16_mel: store the inter-stage mel spectrogram in bf16 (halves the
                  inter-stage HBM traffic, ~0.03 dB perturbation).
    """
    hop_length = hop_length if hop_length else win_length // 2
    n_fft = n_fft if n_fft else win_length
    dflt_tile, dflt_vmem = _device_defaults()
    tile_frames = tile_frames if tile_frames else dflt_tile
    vmem_limit = vmem_limit if vmem_limit else dflt_vmem
    batch, time = x.shape
    fn = _build_mfcc_fn(batch, time, sample_rate, n_feature, out_dim, win_length,
                        hop_length, n_fft, n_mels, tile_frames, vmem_limit,
                        bool(use_bf16_dft), bool(use_bf16_mel))
    return fn(x.astype(jnp.float32))


# ----------------------------------- main ------------------------------------

if __name__ == "__main__":
    # Small, module-consistent shapes:
    # batch=2, time=1024, win_length=n_fft=256, hop=128 -> n_frames = 9,
    # n_feature (n_mfcc) = 13, out_dim = 16 (!= 9, so the bilinear resize path runs).
    key = jax.random.PRNGKey(0)
    batch, time = 2, 1024
    x = jax.random.normal(key, (batch, time), dtype=jnp.float32)

    y = mfcc_extractor(
        x,
        sample_rate=16000,
        n_feature=13,
        out_dim=16,
        win_length=256,
    )
    y = jax.block_until_ready(y)
    assert y.shape == (batch, 16, 13), y.shape
    assert jnp.all(jnp.isfinite(y))
    # TODO(synk): the module's first-run logging.warning / state flag has no
    # kernel equivalent and is intentionally omitted (no numerical effect).
    print("KERNEL_OK")
</pallas_src>

<mosaic_0001>
module attributes {stable_mosaic.version = 11 : i64} {
  func.func @mel_kernel(%arg0: i32, %arg1: memref<16x256xbf16, #tpu.memory_space<vmem>>, %arg2: memref<256x384xbf16, #tpu.memory_space<vmem>>, %arg3: memref<384x128xf32, #tpu.memory_space<vmem>>, %arg4: memref<16x128xf32, #tpu.memory_space<vmem>>, %arg5: memref<1x1x128xf32, #tpu.memory_space<vmem>>) attributes {dimension_semantics = [#tpu.dimension_semantics<parallel>], iteration_bounds = array<i64: 2>, scalar_prefetch = 0 : i64, scratch_operands = 0 : i64, tpu.core_type = #tpu.core_type<tc>, window_params = [{transform_indices = @transform_0, window_bounds = array<i64: 16, 256>}, {pipeline_mode = #tpu.pipeline_mode<synchronous>, transform_indices = @transform_1, window_bounds = array<i64: 256, 384>}, {pipeline_mode = #tpu.pipeline_mode<synchronous>, transform_indices = @transform_2, window_bounds = array<i64: 384, 128>}, {transform_indices = @transform_3, window_bounds = array<i64: 16, 128>}, {transform_indices = @transform_4, window_bounds = array<i64: 1, 1, 128>}]} {
    %c0 = arith.constant 0 : index
    %c0_0 = arith.constant 0 : index
    %0 = vector.load %arg1[%c0, %c0_0] : memref<16x256xbf16, #tpu.memory_space<vmem>>, vector<16x256xbf16>
    %c0_1 = arith.constant 0 : index
    %c0_2 = arith.constant 0 : index
    %1 = vector.load %arg2[%c0_1, %c0_2] : memref<256x384xbf16, #tpu.memory_space<vmem>>, vector<256x384xbf16>
    %cst = arith.constant dense<0.000000e+00> : vector<16x384xf32>
    %2 = tpu.matmul %0, %1, %cst {dimension_numbers = #tpu.dot_dimension_numbers<[1], [0], [0], [1], [0, 0, 1, 1], [], []>} : vector<16x256xbf16>, vector<256x384xbf16>, vector<16x384xf32> -> vector<16x384xf32>
    %3 = arith.mulf %2, %2 : vector<16x384xf32>
    %c0_3 = arith.constant 0 : index
    %c0_4 = arith.constant 0 : index
    %4 = vector.load %arg3[%c0_3, %c0_4] : memref<384x128xf32, #tpu.memory_space<vmem>>, vector<384x128xf32>
    %cst_5 = arith.constant dense<0.000000e+00> : vector<16x128xf32>
    %5 = tpu.matmul %3, %4, %cst_5 {dimension_numbers = #tpu.dot_dimension_numbers<[1], [0], [0], [1], [0, 0, 1, 1], [], []>} : vector<16x384xf32>, vector<384x128xf32>, vector<16x128xf32> -> vector<16x128xf32>
    %c0_6 = arith.constant 0 : index
    %c0_7 = arith.constant 0 : index
    %6 = vector.load %arg4[%c0_6, %c0_7] : memref<16x128xf32, #tpu.memory_space<vmem>>, vector<16x128xf32>
    tpu.vector_store %arg4[%c0_6, %c0_7], %5 {strides = array<i32>} : memref<16x128xf32, #tpu.memory_space<vmem>>, vector<16x128xf32>,
    %cst_8 = arith.constant dense<0xFF800000> : vector<128xf32>
    %7 = vector.multi_reduction <maximumf>, %5, %cst_8 [0] : vector<16x128xf32> to vector<128xf32>
    %8 = vector.shape_cast %7 : vector<128xf32> to vector<1x128xf32>
    %9 = vector.shape_cast %8 : vector<1x128xf32> to vector<1x1x128xf32>
    %c0_9 = arith.constant 0 : index
    %c0_10 = arith.constant 0 : index
    %c0_11 = arith.constant 0 : index
    %10 = vector.load %arg5[%c0_9, %c0_10, %c0_11] : memref<1x1x128xf32, #tpu.memory_space<vmem>>, vector<1x1x128xf32>
    tpu.vector_store %arg5[%c0_9, %c0_10, %c0_11], %9 {strides = array<i32>} : memref<1x1x128xf32, #tpu.memory_space<vmem>>, vector<1x1x128xf32>,
    return
  }
  func.func @transform_0(%arg0: i32) -> (i32, i32) {
    %c0_i32 = arith.constant 0 : i32
    %c0_i32_0 = arith.constant 0 : i32
    return %arg0, %c0_i32 : i32, i32
  }
  func.func @transform_1(%arg0: i32) -> (i32, i32) {
    %c0_i32 = arith.constant 0 : i32
    %c0_i32_0 = arith.constant 0 : i32
    %c0_i32_1 = arith.constant 0 : i32
    return %c0_i32, %c0_i32_0 : i32, i32
  }
  func.func @transform_2(%arg0: i32) -> (i32, i32) {
    %c0_i32 = arith.constant 0 : i32
    %c0_i32_0 = arith.constant 0 : i32
    %c0_i32_1 = arith.constant 0 : i32
    return %c0_i32, %c0_i32_0 : i32, i32
  }
  func.func @transform_3(%arg0: i32) -> (i32, i32) {
    %c0_i32 = arith.constant 0 : i32
    %c0_i32_0 = arith.constant 0 : i32
    return %arg0, %c0_i32 : i32, i32
  }
  func.func @transform_4(%arg0: i32) -> (i32, i32, i32) {
    %c0_i32 = arith.constant 0 : i32
    %c0_i32_0 = arith.constant 0 : i32
    %c0_i32_1 = arith.constant 0 : i32
    return %arg0, %c0_i32, %c0_i32_0 : i32, i32, i32
  }
}

module attributes {stable_mosaic.version = 11 : i64} {
  func.func @mfcc_kernel(%arg0: i32, %arg1: i32, %arg2: memref<2xf32, #tpu.memory_space<smem>>, %arg3: memref<1x16x128xf32, #tpu.memory_space<vmem>>, %arg4: memref<128x128xf32, #tpu.memory_space<vmem>>, %arg5: memref<16x16xf32, #tpu.memory_space<vmem>>, %arg6: memref<1x16x128xf32, #tpu.memory_space<vmem>>) attributes {dimension_semantics = [#tpu.dimension_semantics<parallel>, #tpu.dimension_semantics<arbitrary>], iteration_bounds = array<i64: 2, 1>, scalar_prefetch = 0 : i64, scratch_operands = 0 : i64, tpu.core_type = #tpu.core_type<tc>, window_params = [{transform_indices = @transform_0, window_bounds = array<i64: 2>}, {transform_indices = @transform_1, window_bounds = array<i64: 1, 16, 128>}, {pipeline_mode = #tpu.pipeline_mode<synchronous>, transform_indices = @transform_2, window_bounds = array<i64: 128, 128>}, {transform_indices = @transform_3, window_bounds = array<i64: 16, 16>}, {transform_indices = @transform_4, window_bounds = array<i64: 1, 16, 128>}]} {
    %c0_i32 = arith.constant 0 : i32
    %0 = arith.cmpi eq, %arg1, %c0_i32 : i32
    %1 = arith.extui %0 : i1 to i32
    %c0_i32_0 = arith.constant 0 : i32
    %2 = arith.cmpi ne, %1, %c0_i32_0 : i32
    scf.if %2 {
      %cst_17 = arith.constant 0.000000e+00 : f32
      %26 = vector.broadcast %cst_17 : f32 to vector<16x128xf32>
      %c0_18 = arith.constant 0 : index
      %c0_19 = arith.constant 0 : index
      %c0_20 = arith.constant 0 : index
      %27 = vector.load %arg6[%c0_18, %c0_19, %c0_20] : memref<1x16x128xf32, #tpu.memory_space<vmem>>, vector<1x16x128xf32>
      %28 = vector.shape_cast %27 : vector<1x16x128xf32> to vector<16x128xf32>
      %29 = vector.shape_cast %26 : vector<16x128xf32> to vector<1x16x128xf32>
      tpu.vector_store %arg6[%c0_18, %c0_19, %c0_20], %29 {strides = array<i32>} : memref<1x16x128xf32, #tpu.memory_space<vmem>>, vector<1x16x128xf32>,
    } else {
    }
    %c0 = arith.constant 0 : index
    %c0_1 = arith.constant 0 : index
    %c0_2 = arith.constant 0 : index
    %3 = vector.load %arg3[%c0, %c0_1, %c0_2] : memref<1x16x128xf32, #tpu.memory_space<vmem>>, vector<1x16x128xf32>
    %4 = vector.shape_cast %3 : vector<1x16x128xf32> to vector<16x128xf32>
    %cst = arith.constant 1.000000e-10 : f32
    %5 = vector.broadcast %cst : f32 to vector<16x128xf32>
    %6 = arith.maximumf %4, %5 : vector<16x128xf32>
    %7 = math.log %6 : vector<16x128xf32>
    %cst_3 = arith.constant 0.434294492 : f32
    %8 = vector.broadcast %cst_3 : f32 to vector<16x128xf32>
    %9 = arith.mulf %7, %8 : vector<16x128xf32>
    %cst_4 = arith.constant 1.000000e+01 : f32
    %10 = vector.broadcast %cst_4 : f32 to vector<16x128xf32>
    %11 = arith.mulf %10, %9 : vector<16x128xf32>
    %12 = arith.index_cast %arg0 : i32 to index
    %13 = memref.load %arg2[%12] : memref<2xf32, #tpu.memory_space<smem>>
    %14 = vector.broadcast %13 : f32 to vector<16x128xf32>
    %15 = arith.maximumf %11, %14 : vector<16x128xf32>
    %c0_5 = arith.constant 0 : index
    %c0_6 = arith.constant 0 : index
    %16 = vector.load %arg4[%c0_5, %c0_6] : memref<128x128xf32, #tpu.memory_space<vmem>>, vector<128x128xf32>
    %cst_7 = arith.constant dense<0.000000e+00> : vector<16x128xf32>
    %17 = tpu.matmul %15, %16, %cst_7 {dimension_numbers = #tpu.dot_dimension_numbers<[1], [0], [0], [1], [0, 0, 1, 1], [], []>} : vector<16x128xf32>, vector<128x128xf32>, vector<16x128xf32> -> vector<16x128xf32>
    %c0_8 = arith.constant 0 : index
    %c0_9 = arith.constant 0 : index
    %c0_10 = arith.constant 0 : index
    %18 = vector.load %arg6[%c0_8, %c0_9, %c0_10] : memref<1x16x128xf32, #tpu.memory_space<vmem>>, vector<1x16x128xf32>
    %19 = vector.shape_cast %18 : vector<1x16x128xf32> to vector<16x128xf32>
    %c0_11 = arith.constant 0 : index
    %c0_12 = arith.constant 0 : index
    %20 = vector.load %arg5[%c0_11, %c0_12] : memref<16x16xf32, #tpu.memory_space<vmem>>, vector<16x16xf32>
    %cst_13 = arith.constant dense<0.000000e+00> : vector<16x128xf32>
    %21 = tpu.matmul %20, %17, %cst_13 {dimension_numbers = #tpu.dot_dimension_numbers<[1], [0], [0], [1], [0, 0, 1, 1], [], []>} : vector<16x16xf32>, vector<16x128xf32>, vector<16x128xf32> -> vector<16x128xf32>
    %22 = arith.addf %19, %21 : vector<16x128xf32>
    %c0_14 = arith.constant 0 : index
    %c0_15 = arith.constant 0 : index
    %c0_16 = arith.constant 0 : index
    %23 = vector.load %arg6[%c0_14, %c0_15, %c0_16] : memref<1x16x128xf32, #tpu.memory_space<vmem>>, vector<1x16x128xf32>
    %24 = vector.shape_cast %23 : vector<1x16x128xf32> to vector<16x128xf32>
    %25 = vector.shape_cast %22 : vector<16x128xf32> to vector<1x16x128xf32>
    tpu.vector_store %arg6[%c0_14, %c0_15, %c0_16], %25 {strides = array<i32>} : memref<1x16x128xf32, #tpu.memory_space<vmem>>, vector<1x16x128xf32>,
    return
  }
  func.func @transform_0(%arg0: i32, %arg1: i32) -> i32 {
    %c0_i32 = arith.constant 0 : i32
    %c0_i32_0 = arith.constant 0 : i32
    return %c0_i32 : i32
  }
  func.func @transform_1(%arg0: i32, %arg1: i32) -> (i32, i32, i32) {
    %c0_i32 = arith.constant 0 : i32
    %c0_i32_0 = arith.constant 0 : i32
    return %arg0, %arg1, %c0_i32 : i32, i32, i32
  }
  func.func @transform_2(%arg0: i32, %arg1: i32) -> (i32, i32) {
    %c0_i32 = arith.constant 0 : i32
    %c0_i32_0 = arith.constant 0 : i32
    %c0_i32_1 = arith.constant 0 : i32
    return %c0_i32, %c0_i32_0 : i32, i32
  }
  func.func @transform_3(%arg0: i32, %arg1: i32) -> (i32, i32) {
    %c0_i32 = arith.constant 0 : i32
    %c0_i32_0 = arith.constant 0 : i32
    return %c0_i32, %arg1 : i32, i32
  }
  func.func @transform_4(%arg0: i32, %arg1: i32) -> (i32, i32, i32) {
    %c0_i32 = arith.constant 0 : i32
    %c0_i32_0 = arith.constant 0 : i32
    %c0_i32_1 = arith.constant 0 : i32
    return %arg0, %c0_i32, %c0_i32_0 : i32, i32, i32
  }
}

</mosaic_0001>

<llo_original>
// kernel: forward.3
$region0: #{forward.3}
  #allocation0 [shape = 'u32[]', space=smem, size = 0x4, offset = 0x4, fixed_abs, tag = 'smem constant byte address 0x4 - core index']
  #allocation1 [shape = 'u32[144,128]{1,0:T(1,128)}', space=vmem, size = 0x12000, scoped, tag = 'internal scratch']
  %s0 = inlined_call_operand.vmem [shape: f32[2], index: 0, kind: input, shape index: {}]
  %s1 = inlined_call_operand.vmem [shape: f32[2,16,128], index: 1, kind: input, shape index: {}]
  %s2 = inlined_call_operand.vmem [shape: f32[128,128], index: 2, kind: input, shape index: {}]
  %s3 = inlined_call_operand.vmem [shape: f32[16,16], index: 3, kind: input, shape index: {}]
  %s4 = inlined_call_operand.vmem [shape: f32[2,16,128], index: 4, kind: output, shape index: {}]
  %s5 = sld [smem:[#allocation0]]
  $region57: #{forward.3} parent=0
    _
  %s7 = ssub.s32 1, %s5
  %s8 = scalar_select 0, %s7, %s5
  $region1: #{forward.3} parent=0
    #allocation2 [shape = 'u8[512]{0}', space=smem, size = 0x200, scoped, tag = 'input window, operand 0, single buffered']
    #allocation3 [shape = 's32[2]{0}', space=sflag, size = 0x8, scoped, tag = 'scoped memory for forward.3']
    %9 = vsyncpa [#allocation3], 0
    loop: start=0, step=1, limit=4
    $region2: #{forward.3} parent=1 // loop_pre_header
      _
    $region3: #{forward.3} parent=1 // loop_header
      %s11 = sphi 0, %s15
      %p12 = scmp.ge.s32.totalorder %s11, 4
      %s18 = sphi 0, %s30
      %s19 = sphi 0, %s26
      %s20 = sphi 0, %s18
      %s21 = sphi 0, %s19
      %s22 = sphi 0, %s20
      %s23 = sphi 0, %s21
      %s31 = sphi 0, %s31
      %s33 = sphi 0, %s31
      %s34 = sphi 0, %s33
      %s48 = sphi 0, %s34
      %s56 = sphi 0, %s58
      %s59 = sphi 0, %s56
      %s60 = sphi 0, %s59
      %s76 = sphi 0, %s60
      %s80 = sphi 0, %s80
      %s82 = sphi 0, %s80
      %s83 = sphi 0, %s82
      %s97 = sphi 0, %s83
      %s103 = sphi 0, %s105
      %s106 = sphi 0, %s103
      %s107 = sphi 0, %s106
      %s123 = sphi 0, %s107
      %s129 = sphi 0, %s131
      %s132 = sphi 0, %s129
      %s133 = sphi 0, %s132
      %s149 = sphi 0, %s133
    $region4: #{forward.3} parent=1 // loop_header_branch
      %14 = sbr.rel (%p12) target = $region8
    $region5: #{forward.3} parent=1 // loop_body
      %s16 = ssub.s32 %s11, 1
      %s17 = ssub.s32 %s11, 2
      %s24 = sadd.s32 1, %s19
      %p25 = scmp.ge.s32.totalorder %s24, 1
      %s26 = scalar_select %p25, 0, %s24
      %s27 = sadd.s32 1, %s18
      %s28 = scalar_select %p25, %s27, %s18
      %p29 = scmp.ge.s32.totalorder %s28, 2
      %s30 = scalar_select %p29, 0, %s28
      %s32 = sadd.s32 %s31, 1
      %p35 = scmp.eq.s32.totalorder %s11, 1
      %p36 = scmp.ne.s32.totalorder %s31, %s33
      %p37 = scmp.eq.s32.totalorder %s11, 0
      %p38 = por %p36, %p37
      %p39 = scmp.ne.s32.totalorder %s31, %s33
      %p40 = scmp.eq.s32.totalorder %s16, 1
      %p41 = por %p39, %p40
      %p42 = scmp.ne.s32.totalorder %s33, %s34
      %p43 = scmp.eq.s32.totalorder %s16, 0
      %p44 = por %p42, %p43
      %p45 = scmp.ne.s32.totalorder %s33, %s34
      %p46 = scmp.eq.s32.totalorder %s17, 1
      %p47 = por %p45, %p46
      %p49 = scmp.ne.s32.totalorder %s34, %s48
      %p50 = scmp.eq.s32.totalorder %s17, 0
      %p51 = por %p49, %p50
      %s52 = ssub.s32 %s18, %s30
      %s53 = ssub.s32 %s19, %s26
      %s54 = sor.u32 %s52, %s53
      %p55 = scmp.eq.s32.totalorder %s54, 0
      %s57 = sadd.s32 %s56, 1
      %s58 = scalar_select %p55, %s56, %s57
      %p61 = pneg %p55
      %p62 = scmp.eq.s32.totalorder %s11, 1
      %p63 = por %p61, %p62
      %p64 = scmp.ne.s32.totalorder %s56, %s59
      %p65 = scmp.eq.s32.totalorder %s11, 0
      %p66 = por %p64, %p65
      %p67 = scmp.ne.s32.totalorder %s56, %s59
      %p68 = scmp.eq.s32.totalorder %s16, 1
      %p69 = por %p67, %p68
      %p70 = scmp.ne.s32.totalorder %s59, %s60
      %p71 = scmp.eq.s32.totalorder %s16, 0
      %p72 = por %p70, %p71
      %p73 = scmp.ne.s32.totalorder %s59, %s60
      %p74 = scmp.eq.s32.totalorder %s17, 1
      %p75 = por %p73, %p74
      %p77 = scmp.ne.s32.totalorder %s60, %s76
      %p78 = scmp.eq.s32.totalorder %s17, 0
      %p79 = por %p77, %p78
      %s81 = sadd.s32 %s80, 1
      %p84 = scmp.eq.s32.totalorder %s11, 1
      %p85 = scmp.ne.s32.totalorder %s80, %s82
      %p86 = scmp.eq.s32.totalorder %s11, 0
      %p87 = por %p85, %p86
      %p88 = scmp.ne.s32.totalorder %s80, %s82
      %p89 = scmp.eq.s32.totalorder %s16, 1
      %p90 = por %p88, %p89
      %p91 = scmp.ne.s32.totalorder %s82, %s83
      %p92 = scmp.eq.s32.totalorder %s16, 0
      %p93 = por %p91, %p92
      %p94 = scmp.ne.s32.totalorder %s82, %s83
      %p95 = scmp.eq.s32.totalorder %s17, 1
      %p96 = por %p94, %p95
      %p98 = scmp.ne.s32.totalorder %s83, %s97
      %p99 = scmp.eq.s32.totalorder %s17, 0
      %p100 = por %p98, %p99
      %s101 = ssub.s32 %s19, %s26
      %p102 = scmp.eq.s32.totalorder %s101, 0
      %s104 = sadd.s32 %s103, 1
      %s105 = scalar_select %p102, %s103, %s104
      %p108 = pneg %p102
      %p109 = scmp.eq.s32.totalorder %s11, 1
      %p110 = por %p108, %p109
      %p111 = scmp.ne.s32.totalorder %s103, %s106
      %p112 = scmp.eq.s32.totalorder %s11, 0
      %p113 = por %p111, %p112
      %p114 = scmp.ne.s32.totalorder %s103, %s106
      %p115 = scmp.eq.s32.totalorder %s16, 1
      %p116 = por %p114, %p115
      %p117 = scmp.ne.s32.totalorder %s106, %s107
      %p118 = scmp.eq.s32.totalorder %s16, 0
      %p119 = por %p117, %p118
      %p120 = scmp.ne.s32.totalorder %s106, %s107
      %p121 = scmp.eq.s32.totalorder %s17, 1
      %p122 = por %p120, %p121
      %p124 = scmp.ne.s32.totalorder %s107, %s123
      %p125 = scmp.eq.s32.totalorder %s17, 0
      %p126 = por %p124, %p125
      %s127 = ssub.s32 %s18, %s30
      %p128 = scmp.eq.s32.totalorder %s127, 0
      %s130 = sadd.s32 %s129, 1
      %s131 = scalar_select %p128, %s129, %s130
      %p134 = pneg %p128
      %p135 = scmp.eq.s32.totalorder %s11, 1
      %p136 = por %p134, %p135
      %p137 = scmp.ne.s32.totalorder %s129, %s132
      %p138 = scmp.eq.s32.totalorder %s11, 0
      %p139 = por %p137, %p138
      %p140 = scmp.ne.s32.totalorder %s129, %s132
      %p141 = scmp.eq.s32.totalorder %s16, 1
      %p142 = por %p140, %p141
      %p143 = scmp.ne.s32.totalorder %s132, %s133
      %p144 = scmp.eq.s32.totalorder %s16, 0
      %p145 = por %p143, %p144
      %p146 = scmp.ne.s32.totalorder %s132, %s133
      %p147 = scmp.eq.s32.totalorder %s17, 1
      %p148 = por %p146, %p147
      %p150 = scmp.ne.s32.totalorder %s133, %s149
      %p151 = scmp.eq.s32.totalorder %s17, 0
      %p152 = por %p150, %p151
      %p153 = scmp.le.s32.totalorder 1, %s11
      %p154 = scmp.lt.s32.totalorder %s11, 3
      %p155 = pnand %p153, %p154
      %p156 = pneg %p155
      // Predicated region
      $region9: #{forward.3} parent=5 // pred_check
        _
      $region10: #{forward.3} parent=5 // pred_check_branch
        %158 = sbr.rel (%p155) target = $region12
      $region11: #{forward.3} parent=5 // pred_region
        %s159 = ssub.s32 %s11, 1
        // Predicated region
        $region13: #{forward.3} parent=11 // pred_check
          %p160 = pneg %p44
        $region14: #{forward.3} parent=11 // pred_check_branch
          %162 = sbr.rel (%p160) target = $region16
        $region15: #{forward.3} parent=11 // pred_region
          %s164 = ssub.s32 16, 16
          %165 = vsyncadd [#allocation3], %s164
          %s167 = sshll.u32 %s0, 4
          %s168 = int_to_ptr.vmem [resolvable:$true] %s167
          %170 = dma.vmem_to_smem %s168, 16, [#allocation2], [#allocation3]
        $region16: #{forward.3} parent=11 // pred_fallthru
          _
        // Predicated region
        $region17: #{forward.3} parent=11 // pred_check
          %p171 = pneg %p93
        $region18: #{forward.3} parent=11 // pred_check_branch
          %173 = sbr.rel (%p171) target = $region20
        $region19: #{forward.3} parent=11 // pred_region
          _
        $region20: #{forward.3} parent=11 // pred_fallthru
          _
        // Predicated region
        $region21: #{forward.3} parent=11 // pred_check
          %p174 = pneg %p119
        $region22: #{forward.3} parent=11 // pred_check_branch
          %176 = sbr.rel (%p174) target = $region24
        $region23: #{forward.3} parent=11 // pred_region
          %p177 = scmp.lt.s32.totalorder %s21, 0
          %s178 = scalar_select %p177, %s21, 0
          %s179 = smul.addr %s178, 8
          %s180 = scalar_lea.vmem %s3, %s179
        $region24: #{forward.3} parent=11 // pred_fallthru
          _
      $region12: #{forward.3} parent=5 // pred_fallthru
        _
      %p181 = scmp.lt.s32.totalorder %s11, 2
      // Predicated region
      $region25: #{forward.3} parent=5 // pred_check
        %p182 = pneg %p181
      $region26: #{forward.3} parent=5 // pred_check_branch
        %184 = sbr.rel (%p182) target = $region28
      $region27: #{forward.3} parent=5 // pred_region
        // Predicated region
        $region29: #{forward.3} parent=27 // pred_check
          %p185 = pneg %p66
        $region30: #{forward.3} parent=27 // pred_check_branch
          %187 = sbr.rel (%p185) target = $region32
        $region31: #{forward.3} parent=27 // pred_region
          %s188 = smul.u32 2, %s19
          %p189 = scmp.lt.s32.totalorder %s18, 1
          %s190 = scalar_select %p189, %s18, 1
          %p191 = scmp.lt.s32.totalorder %s188, 1
          %s192 = scalar_select %p191, %s188, 1
          %s193 = smul.addr %s190, 2
          %s194 = sadd.s32 %s192, %s193
          %s195 = smul.addr %s194, 8
          %s196 = scalar_lea.vmem %s1, %s195
          %s197 = smul.u32 2, %s19
        $region32: #{forward.3} parent=27 // pred_fallthru
          _
      $region28: #{forward.3} parent=5 // pred_fallthru
        _
      %p198 = scmp.le.s32.totalorder 1, %s11
      %p199 = scmp.lt.s32.totalorder %s11, 3
      %p200 = pnand %p198, %p199
      %p201 = pneg %p200
      // Predicated region
      $region33: #{forward.3} parent=5 // pred_check
        _
      $region34: #{forward.3} parent=5 // pred_check_branch
        %203 = sbr.rel (%p200) target = $region36
      $region35: #{forward.3} parent=5 // pred_region
        %s204 = ssub.s32 %s11, 1
        // Predicated region
        $region37: #{forward.3} parent=35 // pred_check
          %p205 = pneg %p44
        $region38: #{forward.3} parent=35 // pred_check_branch
          %207 = sbr.rel (%p205) target = $region40
        $region39: #{forward.3} parent=35 // pred_region
          %208 = dma.done [#allocation3], 16
        $region40: #{forward.3} parent=35 // pred_fallthru
          _
        %209 = sfence
        %p210 = pneg %p44
        %p211 = pneg %p41
        %s212 = smul.u32 2, %s21
        %p213 = scmp.lt.s32.totalorder %s20, 1
        %s214 = scalar_select %p213, %s20, 1
        %p215 = scmp.lt.s32.totalorder %s212, 1
        %s216 = scalar_select %p215, %s212, 1
        %s217 = smul.addr %s214, 2
        %s218 = sadd.s32 %s216, %s217
        %s219 = smul.addr %s218, 8
        %s220 = scalar_lea.vmem %s1, %s219
        %p221 = pneg %p72
        %p222 = pneg %p69
        %p223 = pneg %p93
        %p224 = pneg %p90
        %p225 = scmp.lt.s32.totalorder %s21, 0
        %s226 = scalar_select %p225, %s21, 0
        %s227 = smul.addr %s226, 8
        %s228 = scalar_lea.vmem %s3, %s227
        %p229 = pneg %p119
        %p230 = pneg %p116
        %p231 = pneg %p145
        %p232 = pneg %p142
        %p233 = scmp.lt.s32.totalorder %s20, 1
        %s234 = scalar_select %p233, %s20, 1
        %s235 = smul.addr %s234, 2
        %s236 = smul.addr %s235, 8
        %s237 = scalar_lea.vmem %s4, %s236
        %s238 = smul.u32 2, %s21
        %p239 = scmp.lt.s32.totalorder %s20, 1
        %s240 = scalar_select %p239, %s20, 1
        %p241 = scmp.lt.s32.totalorder %s238, 1
        %s242 = scalar_select %p241, %s238, 1
        %s243 = smul.addr %s240, 2
        %s244 = sadd.s32 %s242, %s243
        %s245 = smul.addr %s244, 8
        %s246 = scalar_lea.vmem %s1, %s245
        %s247 = smul.u32 2, %s21
        %p248 = scmp.lt.s32.totalorder %s21, 0
        %s249 = scalar_select %p248, %s21, 0
        %s250 = smul.addr %s249, 8
        %s251 = scalar_lea.vmem %s3, %s250
        %p252 = scmp.lt.s32.totalorder %s20, 1
        %s253 = scalar_select %p252, %s20, 1
        %s254 = smul.addr %s253, 2
        %s255 = smul.addr %s254, 8
        %s256 = scalar_lea.vmem %s4, %s255
        %p257 = scmp.eq.s32.totalorder %s21, 0
        // Predicated region
        $region41: #{forward.3} parent=35 // pred_check
          %p258 = pneg %p257
        $region42: #{forward.3} parent=35 // pred_check_branch
          %260 = sbr.rel (%p258) target = $region44
        $region43: #{forward.3} parent=35 // pred_region
          %261 = vst [vmem:[%s256] sm:$0xff] 0.0
          %262 = vst [vmem:[%s256 + $0x8] sm:$0xff] 0.0
        $region44: #{forward.3} parent=35 // pred_fallthru
          _
        %v263 = vld [vmem:[%s246] sm:$0xff]
        %v264 = vld [vmem:[%s246 + $0x8] sm:$0xff]
        %v265 = vmax.f32 %v263, 1e-10
        %v266 = vmax.f32 %v264, 1e-10
        %v267 = vlog2.pop %v265
        %v268 = vmul.f32 %v267, 0.6931472
        %v269 = vlog2.pop %v266
        %v270 = vmul.f32 %v269, 0.6931472
        %v271 = vmul.f32 %v268, 0.4342945
        %v272 = vmul.f32 %v270, 0.4342945
        %v273 = vmul.f32 %v271, 10.0
        %v274 = vmul.f32 %v272, 10.0
        %s275 = sld [smem:[#allocation2 + %s20]]
        %v276 = vstv %s275
        %v277 = vmax.f32 %v273, %v276
        %v278 = vmax.f32 %v274, %v276
        %v279 = vld [vmem:[%s2] sm:$0xff]
        %v280 = vld [vmem:[%s2 + $0x8] sm:$0xff]
        %v281 = vld [vmem:[%s2 + $0x10] sm:$0xff]
        %v282 = vld [vmem:[%s2 + $0x18] sm:$0xff]
        %v283 = vld [vmem:[%s2 + $0x20] sm:$0xff]
        %v284 = vld [vmem:[%s2 + $0x28] sm:$0xff]
        %v285 = vld [vmem:[%s2 + $0x30] sm:$0xff]
        %v286 = vld [vmem:[%s2 + $0x38] sm:$0xff]
        %v287 = vld [vmem:[%s2 + $0x40] sm:$0xff]
        %v288 = vld [vmem:[%s2 + $0x48] sm:$0xff]
        %v289 = vld [vmem:[%s2 + $0x50] sm:$0xff]
        %v290 = vld [vmem:[%s2 + $0x58] sm:$0xff]
        %v291 = vld [vmem:[%s2 + $0x60] sm:$0xff]
        %v292 = vld [vmem:[%s2 + $0x68] sm:$0xff]
        %v293 = vld [vmem:[%s2 + $0x70] sm:$0xff]
        %v294 = vld [vmem:[%s2 + $0x78] sm:$0xff]
        %295 = vmatprep.subr.mxu0 0.0
        %296 = vmatpush1.msra.mxu0 %v294
        %297 = vmatprep.subr.mxu0 0.0
        %298 = vmatpush1.msra.mxu0 %v293
        %299 = vmatprep.subr.mxu0 0.0
        %300 = vmatpush1.msra.mxu0 %v292
        %301 = vmatprep.subr.mxu0 0.0
        %302 = vmatpush1.msra.mxu0 %v291
        %303 = vmatprep.subr.mxu0 0.0
        %304 = vmatpush1.msra.mxu0 %v290
        %305 = vmatprep.subr.mxu0 0.0
        %306 = vmatpush1.msra.mxu0 %v289
        %307 = vmatprep.subr.mxu0 0.0
        %308 = vmatpush1.msra.mxu0 %v288
        %309 = vmatprep.subr.mxu0 0.0
        %310 = vmatpush1.msra.mxu0 %v287
        %311 = vmatprep.subr.mxu0 0.0
        %312 = vmatpush1.msra.mxu0 %v286
        %313 = vmatprep.subr.mxu0 0.0
        %314 = vmatpush1.msra.mxu0 %v285
        %315 = vmatprep.subr.mxu0 0.0
        %316 = vmatpush1.msra.mxu0 %v284
        %317 = vmatprep.subr.mxu0 0.0
        %318 = vmatpush1.msra.mxu0 %v283
        %319 = vmatprep.subr.mxu0 0.0
        %320 = vmatpush1.msra.mxu0 %v282
        %321 = vmatprep.subr.mxu0 0.0
        %322 = vmatpush1.msra.mxu0 %v281
        %323 = vmatprep.subr.mxu0 0.0
        %324 = vmatpush1.msra.mxu0 %v280
        %325 = vmatprep.subr.mxu0 0.0
        %326 = vmatpush1.msra.mxu0 %v279
        %327 = vmatprep.subr.mxu0 0.0
        %328 = vmatpush2.msra.mxu0 0.0
        %329 = vmatprep.subr.mxu0 0.0
        %330 = vmatpush2.msra.mxu0 0.0
        %331 = vmatprep.subr.mxu0 0.0
        %332 = vmatpush2.msra.mxu0 0.0
        %333 = vmatprep.subr.mxu0 0.0
        %334 = vmatpush2.msra.mxu0 0.0
        %335 = vmatprep.subr.mxu0 0.0
        %336 = vmatpush2.msra.mxu0 0.0
        %337 = vmatprep.subr.mxu0 0.0
        %338 = vmatpush2.msra.mxu0 0.0
        %339 = vmatprep.subr.mxu0 0.0
        %340 = vmatpush2.msra.mxu0 0.0
        %341 = vmatprep.subr.mxu0 0.0
        %342 = vmatpush2.msra.mxu0 0.0
        %343 = vmatprep.subr.mxu0 0.0
        %344 = vmatpush2.msra.mxu0 0.0
        %345 = vmatprep.subr.mxu0 0.0
        %346 = vmatpush2.msra.mxu0 0.0
        %347 = vmatprep.subr.mxu0 0.0
        %348 = vmatpush2.msra.mxu0 0.0
        %349 = vmatprep.subr.mxu0 0.0
        %350 = vmatpush2.msra.mxu0 0.0
        %351 = vmatprep.subr.mxu0 0.0
        %352 = vmatpush2.msra.mxu0 0.0
        %353 = vmatprep.subr.mxu0 0.0
        %354 = vmatpush2.msra.mxu0 0.0
        %355 = vmatprep.subr.mxu0 0.0
        %356 = vmatpush2.msra.mxu0 0.0
        %357 = vmatprep.subr.mxu0 0.0
        %358 = vmatpush2.msra.mxu0 0.0
        %359 = vmatprep.mubr.f32.mxu0 0.0
        %360 = vmatmul.mubr.f32.gmra.mxu0 %v277
        %v361 = vpop.f32.mrf.mxu0
        %v362 = vadd.f32 0.0, %v361
        %v363 = vpop.f32.mrf.mxu0
        %364 = vmatprep.mubr.f32.mxu0 0.0
        %365 = vmatmul.mubr.f32.gmra.mxu0 %v278
        %v366 = vpop.f32.mrf.mxu0
        %v367 = vadd.f32 0.0, %v366
        %v368 = vpop.f32.mrf.mxu0
        %369 = vdwg.mxu0
        %v370 = vld [vmem:[%s256] sm:$0xff]
        %v371 = vld [vmem:[%s256 + $0x8] sm:$0xff]
        %v372 = vld [vmem:[%s251] sm:$0xff]
        %v373 = vld [vmem:[%s251 + $0x8] sm:$0xff]
        %vm374 = vcmask 130048
        %v376 = vsel %vm374, %v372, 0
        %v379 = vsel %vm374, %v373, 0
        %381 = vmatprep.subr.mxu0 0.0
        %382 = vmatpush1.msra.mxu0 0.0
        %383 = vmatprep.subr.mxu0 0.0
        %384 = vmatpush1.msra.mxu0 0.0
        %385 = vmatprep.subr.mxu0 0.0
        %386 = vmatpush1.msra.mxu0 0.0
        %387 = vmatprep.subr.mxu0 0.0
        %388 = vmatpush1.msra.mxu0 0.0
        %389 = vmatprep.subr.mxu0 0.0
        %390 = vmatpush1.msra.mxu0 0.0
        %391 = vmatprep.subr.mxu0 0.0
        %392 = vmatpush1.msra.mxu0 0.0
        %393 = vmatprep.subr.mxu0 0.0
        %394 = vmatpush1.msra.mxu0 0.0
        %395 = vmatprep.subr.mxu0 0.0
        %396 = vmatpush1.msra.mxu0 0.0
        %397 = vmatprep.subr.mxu0 0.0
        %398 = vmatpush1.msra.mxu0 0.0
        %399 = vmatprep.subr.mxu0 0.0
        %400 = vmatpush1.msra.mxu0 0.0
        %401 = vmatprep.subr.mxu0 0.0
        %402 = vmatpush1.msra.mxu0 0.0
        %403 = vmatprep.subr.mxu0 0.0
        %404 = vmatpush1.msra.mxu0 0.0
        %405 = vmatprep.subr.mxu0 0.0
        %406 = vmatpush1.msra.mxu0 0.0
        %407 = vmatprep.subr.mxu0 0.0
        %408 = vmatpush1.msra.mxu0 0.0
        %409 = vmatprep.subr.mxu0 0.0
        %410 = vmatpush1.msra.mxu0 %v367
        %411 = vmatprep.subr.mxu0 0.0
        %412 = vmatpush1.msra.mxu0 %v362
        %413 = vmatprep.subr.mxu0 0.0
        %414 = vmatpush2.msra.mxu0 0.0
        %415 = vmatprep.subr.mxu0 0.0
        %416 = vmatpush2.msra.mxu0 0.0
        %417 = vmatprep.subr.mxu0 0.0
        %418 = vmatpush2.msra.mxu0 0.0
        %419 = vmatprep.subr.mxu0 0.0
        %420 = vmatpush2.msra.mxu0 0.0
        %421 = vmatprep.subr.mxu0 0.0
        %422 = vmatpush2.msra.mxu0 0.0
        %423 = vmatprep.subr.mxu0 0.0
        %424 = vmatpush2.msra.mxu0 0.0
        %425 = vmatprep.subr.mxu0 0.0
        %426 = vmatpush2.msra.mxu0 0.0
        %427 = vmatprep.subr.mxu0 0.0
        %428 = vmatpush2.msra.mxu0 0.0
        %429 = vmatprep.subr.mxu0 0.0
        %430 = vmatpush2.msra.mxu0 0.0
        %431 = vmatprep.subr.mxu0 0.0
        %432 = vmatpush2.msra.mxu0 0.0
        %433 = vmatprep.subr.mxu0 0.0
        %434 = vmatpush2.msra.mxu0 0.0
        %435 = vmatprep.subr.mxu0 0.0
        %436 = vmatpush2.msra.mxu0 0.0
        %437 = vmatprep.subr.mxu0 0.0
        %438 = vmatpush2.msra.mxu0 0.0
        %439 = vmatprep.subr.mxu0 0.0
        %440 = vmatpush2.msra.mxu0 0.0
        %441 = vmatprep.subr.mxu0 0.0
        %442 = vmatpush2.msra.mxu0 0.0
        %443 = vmatprep.subr.mxu0 0.0
        %444 = vmatpush2.msra.mxu0 0.0
        %445 = vmatprep.mubr.f32.mxu0 0.0
        %446 = vmatmul.mubr.f32.gmra.mxu0 %v376
        %v447 = vpop.f32.mrf.mxu0
        %v448 = vadd.f32 0.0, %v447
        %v449 = vpop.f32.mrf.mxu0
        %450 = vmatprep.mubr.f32.mxu0 0.0
        %451 = vmatmul.mubr.f32.gmra.mxu0 %v379
        %v452 = vpop.f32.mrf.mxu0
        %v453 = vadd.f32 0.0, %v452
        %v454 = vpop.f32.mrf.mxu0
        %455 = vdwg.mxu0
        %v456 = vadd.f32 %v370, %v448
        %v457 = vadd.f32 %v371, %v453
        %458 = vst [vmem:[%s256] sm:$0xff] %v456
        %459 = vst [vmem:[%s256 + $0x8] sm:$0xff] %v457
        %p460 = scmp.lt.s32.totalorder %s20, 1
        %s461 = scalar_select %p460, %s20, 1
        %s462 = smul.addr %s461, 2
        %s463 = smul.addr %s462, 8
        %s464 = scalar_lea.vmem %s4, %s463
        // Predicated region
        $region45: #{forward.3} parent=35 // pred_check
          %p465 = pneg %p142
        $region46: #{forward.3} parent=35 // pred_check_branch
          %467 = sbr.rel (%p465) target = $region48
        $region47: #{forward.3} parent=35 // pred_region
          _
        $region48: #{forward.3} parent=35 // pred_fallthru
          _
      $region36: #{forward.3} parent=5 // pred_fallthru
        _
      %p468 = scmp.le.s32.totalorder 2, %s11
      // Predicated region
      $region49: #{forward.3} parent=5 // pred_check
        %p469 = pneg %p468
      $region50: #{forward.3} parent=5 // pred_check_branch
        %471 = sbr.rel (%p469) target = $region52
      $region51: #{forward.3} parent=5 // pred_region
        %s472 = ssub.s32 %s11, 2
        // Predicated region
        $region53: #{forward.3} parent=51 // pred_check
          %p473 = pneg %p148
        $region54: #{forward.3} parent=51 // pred_check_branch
          %475 = sbr.rel (%p473) target = $region56
        $region55: #{forward.3} parent=51 // pred_region
          %p476 = scmp.lt.s32.totalorder %s22, 1
          %s477 = scalar_select %p476, %s22, 1
          %s478 = smul.addr %s477, 2
          %s479 = smul.addr %s478, 8
          %s480 = scalar_lea.vmem %s4, %s479
        $region56: #{forward.3} parent=51 // pred_fallthru
          _
      $region52: #{forward.3} parent=5 // pred_fallthru
        _
    $region6: #{forward.3} parent=1 // loop_footer
      %s15 = sadd.s32 1, %s11
    $region7: #{forward.3} parent=1 // loop_footer_branch
      %10 = sbr.rel target = $region3
    $region8: #{forward.3} parent=1 // loop_exit
      _
    %481 = vsyncpa [#allocation3], 1
    %s482 = scalar_lea.sflag [#allocation3], 1
    %483 = vsyncpa %s482, 1

// kernel: forward.2
$region0: #{forward.2}
  #allocation0 [shape = 'u32[]', space=smem, size = 0x4, offset = 0x4, fixed_abs, tag = 'smem constant byte address 0x4 - core index']
  #allocation1 [shape = 'u32[144,128]{1,0:T(1,128)}', space=vmem, size = 0x12000, scoped, tag = 'internal scratch']
  %s0 = inlined_call_operand.vmem [shape: bf16[32,256], index: 0, kind: input, shape index: {}]
  %s1 = inlined_call_operand.hbm [shape: bf16[256,384], index: 1, kind: input, shape index: {}]
  %s2 = inlined_call_operand.hbm [shape: f32[384,128], index: 2, kind: input, shape index: {}]
  %s3 = inlined_call_operand.vmem [shape: f32[32,128], index: 3, kind: output, shape index: {0}]
  %s4 = inlined_call_operand.vmem [shape: f32[2,1,128], index: 4, kind: output, shape index: {1}]
  %5 = xla_tuple %s3, %s4
  %s6 = sld [smem:[#allocation0]]
  $region61: #{forward.2} parent=0
    _
  %s8 = ssub.s32 1, %s6
  %s9 = scalar_select 0, %s8, %s6
  $region1: #{forward.2} parent=0
    #allocation2 [shape = 'u8[196608]{0}', space=vmem, size = 0x30000, scoped, tag = 'input window, operand 1, single buffered']
    #allocation3 [shape = 's32[2]{0}', space=sflag, size = 0x8, scoped, tag = 'scoped memory for forward.2']
    #allocation4 [shape = 'u8[196608]{0}', space=vmem, size = 0x30000, scoped, tag = 'input window, operand 2, single buffered']
    #allocation5 [shape = 's32[1]{0}', space=sflag, size = 0x4, scoped, tag = 'scoped memory for forward.2']
    %10 = vsyncpa [#allocation3], 0
    %11 = vsyncpa [#allocation5], 0
    loop: start=0, step=1, limit=4
    $region2: #{forward.2} parent=1 // loop_pre_header
      _
    $region3: #{forward.2} parent=1 // loop_header
      %s13 = sphi 0, %s17
      %p14 = scmp.ge.s32.totalorder %s13, 4
      %s23 = sphi 0, %s25
      %s26 = sphi 0, %s23
      %s27 = sphi 0, %s26
      %s43 = sphi 0, %s27
      %s47 = sphi 0, %s47
      %s49 = sphi 0, %s47
      %s50 = sphi 0, %s49
      %s64 = sphi 0, %s50
      %s68 = sphi 0, %s68
      %s70 = sphi 0, %s68
      %s71 = sphi 0, %s70
      %s85 = sphi 0, %s71
      %s91 = sphi 0, %s93
      %s94 = sphi 0, %s91
      %s95 = sphi 0, %s94
      %s111 = sphi 0, %s95
      %s117 = sphi 0, %s119
      %s120 = sphi 0, %s117
      %s121 = sphi 0, %s120
      %s137 = sphi 0, %s121
    $region4: #{forward.2} parent=1 // loop_header_branch
      %16 = sbr.rel (%p14) target = $region8
    $region5: #{forward.2} parent=1 // loop_body
      %s18 = ssub.s32 %s13, 1
      %s19 = ssub.s32 %s13, 2
      %s20 = sadd.s32 %s13, 1
      %s21 = ssub.s32 %s13, %s20
      %p22 = scmp.eq.s32.totalorder %s21, 0
      %s24 = sadd.s32 %s23, 1
      %s25 = scalar_select %p22, %s23, %s24
      %p28 = pneg %p22
      %p29 = scmp.eq.s32.totalorder %s13, 1
      %p30 = por %p28, %p29
      %p31 = scmp.ne.s32.totalorder %s23, %s26
      %p32 = scmp.eq.s32.totalorder %s13, 0
      %p33 = por %p31, %p32
      %p34 = scmp.ne.s32.totalorder %s23, %s26
      %p35 = scmp.eq.s32.totalorder %s18, 1
      %p36 = por %p34, %p35
      %p37 = scmp.ne.s32.totalorder %s26, %s27
      %p38 = scmp.eq.s32.totalorder %s18, 0
      %p39 = por %p37, %p38
      %p40 = scmp.ne.s32.totalorder %s26, %s27
      %p41 = scmp.eq.s32.totalorder %s19, 1
      %p42 = por %p40, %p41
      %p44 = scmp.ne.s32.totalorder %s27, %s43
      %p45 = scmp.eq.s32.totalorder %s19, 0
      %p46 = por %p44, %p45
      %s48 = sadd.s32 %s47, 1
      %p51 = scmp.eq.s32.totalorder %s13, 1
      %p52 = scmp.ne.s32.totalorder %s47, %s49
      %p53 = scmp.eq.s32.totalorder %s13, 0
      %p54 = por %p52, %p53
      %p55 = scmp.ne.s32.totalorder %s47, %s49
      %p56 = scmp.eq.s32.totalorder %s18, 1
      %p57 = por %p55, %p56
      %p58 = scmp.ne.s32.totalorder %s49, %s50
      %p59 = scmp.eq.s32.totalorder %s18, 0
      %p60 = por %p58, %p59
      %p61 = scmp.ne.s32.totalorder %s49, %s50
      %p62 = scmp.eq.s32.totalorder %s19, 1
      %p63 = por %p61, %p62
      %p65 = scmp.ne.s32.totalorder %s50, %s64
      %p66 = scmp.eq.s32.totalorder %s19, 0
      %p67 = por %p65, %p66
      %s69 = sadd.s32 %s68, 1
      %p72 = scmp.eq.s32.totalorder %s13, 1
      %p73 = scmp.ne.s32.totalorder %s68, %s70
      %p74 = scmp.eq.s32.totalorder %s13, 0
      %p75 = por %p73, %p74
      %p76 = scmp.ne.s32.totalorder %s68, %s70
      %p77 = scmp.eq.s32.totalorder %s18, 1
      %p78 = por %p76, %p77
      %p79 = scmp.ne.s32.totalorder %s70, %s71
      %p80 = scmp.eq.s32.totalorder %s18, 0
      %p81 = por %p79, %p80
      %p82 = scmp.ne.s32.totalorder %s70, %s71
      %p83 = scmp.eq.s32.totalorder %s19, 1
      %p84 = por %p82, %p83
      %p86 = scmp.ne.s32.totalorder %s71, %s85
      %p87 = scmp.eq.s32.totalorder %s19, 0
      %p88 = por %p86, %p87
      %s89 = ssub.s32 %s13, %s20
      %p90 = scmp.eq.s32.totalorder %s89, 0
      %s92 = sadd.s32 %s91, 1
      %s93 = scalar_select %p90, %s91, %s92
      %p96 = pneg %p90
      %p97 = scmp.eq.s32.totalorder %s13, 1
      %p98 = por %p96, %p97
      %p99 = scmp.ne.s32.totalorder %s91, %s94
      %p100 = scmp.eq.s32.totalorder %s13, 0
      %p101 = por %p99, %p100
      %p102 = scmp.ne.s32.totalorder %s91, %s94
      %p103 = scmp.eq.s32.totalorder %s18, 1
      %p104 = por %p102, %p103
      %p105 = scmp.ne.s32.totalorder %s94, %s95
      %p106 = scmp.eq.s32.totalorder %s18, 0
      %p107 = por %p105, %p106
      %p108 = scmp.ne.s32.totalorder %s94, %s95
      %p109 = scmp.eq.s32.totalorder %s19, 1
      %p110 = por %p108, %p109
      %p112 = scmp.ne.s32.totalorder %s95, %s111
      %p113 = scmp.eq.s32.totalorder %s19, 0
      %p114 = por %p112, %p113
      %s115 = ssub.s32 %s13, %s20
      %p116 = scmp.eq.s32.totalorder %s115, 0
      %s118 = sadd.s32 %s117, 1
      %s119 = scalar_select %p116, %s117, %s118
      %p122 = pneg %p116
      %p123 = scmp.eq.s32.totalorder %s13, 1
      %p124 = por %p122, %p123
      %p125 = scmp.ne.s32.totalorder %s117, %s120
      %p126 = scmp.eq.s32.totalorder %s13, 0
      %p127 = por %p125, %p126
      %p128 = scmp.ne.s32.totalorder %s117, %s120
      %p129 = scmp.eq.s32.totalorder %s18, 1
      %p130 = por %p128, %p129
      %p131 = scmp.ne.s32.totalorder %s120, %s121
      %p132 = scmp.eq.s32.totalorder %s18, 0
      %p133 = por %p131, %p132
      %p134 = scmp.ne.s32.totalorder %s120, %s121
      %p135 = scmp.eq.s32.totalorder %s19, 1
      %p136 = por %p134, %p135
      %p138 = scmp.ne.s32.totalorder %s121, %s137
      %p139 = scmp.eq.s32.totalorder %s19, 0
      %p140 = por %p138, %p139
      %p141 = scmp.le.s32.totalorder 1, %s13
      %p142 = scmp.lt.s32.totalorder %s13, 3
      %p143 = pnand %p141, %p142
      %p144 = pneg %p143
      // Predicated region
      $region9: #{forward.2} parent=5 // pred_check
        _
      $region10: #{forward.2} parent=5 // pred_check_branch
        %146 = sbr.rel (%p143) target = $region12
      $region11: #{forward.2} parent=5 // pred_region
        %s147 = ssub.s32 %s13, 1
        // Predicated region
        $region13: #{forward.2} parent=11 // pred_check
          %p148 = pneg %p60
        $region14: #{forward.2} parent=11 // pred_check_branch
          %150 = sbr.rel (%p148) target = $region16
        $region15: #{forward.2} parent=11 // pred_region
          %s152 = ssub.s32 6144, 6144
          %153 = vsyncadd [#allocation3], %s152
          %s154 = sshll.u32 [#allocation2], 4
          %s155 = int_to_ptr.vmem [resolvable:$true] %s154
          %160 = dma.hbm_to_vmem [thread:$0]  %s1, 6144, %s155, [#allocation3], 192, 192, 12
        $region16: #{forward.2} parent=11 // pred_fallthru
          _
        // Predicated region
        $region17: #{forward.2} parent=11 // pred_check
          %p161 = pneg %p81
        $region18: #{forward.2} parent=11 // pred_check_branch
          %163 = sbr.rel (%p161) target = $region20
        $region19: #{forward.2} parent=11 // pred_region
          %s165 = ssub.s32 6144, 6144
          %166 = vsyncadd [#allocation5], %s165
          %s167 = sshll.u32 [#allocation4], 4
          %s168 = int_to_ptr.vmem [resolvable:$true] %s167
          %173 = dma.hbm_to_vmem [thread:$0]  %s2, 6144, %s168, [#allocation5], 128, 128, 8
        $region20: #{forward.2} parent=11 // pred_fallthru
          _
      $region12: #{forward.2} parent=5 // pred_fallthru
        _
      %p174 = scmp.lt.s32.totalorder %s13, 2
      // Predicated region
      $region21: #{forward.2} parent=5 // pred_check
        %p175 = pneg %p174
      $region22: #{forward.2} parent=5 // pred_check_branch
        %177 = sbr.rel (%p175) target = $region24
      $region23: #{forward.2} parent=5 // pred_region
        // Predicated region
        $region25: #{forward.2} parent=23 // pred_check
          %p178 = pneg %p33
        $region26: #{forward.2} parent=23 // pred_check_branch
          %180 = sbr.rel (%p178) target = $region28
        $region27: #{forward.2} parent=23 // pred_region
          %s181 = smul.u32 2, %s13
          %p182 = scmp.lt.s32.totalorder %s181, 3
          %s183 = scalar_select %p182, %s181, 3
          %s184 = smul.addr %s183, 2
          %s185 = smul.addr %s184, 4
          %s186 = scalar_lea.vmem %s0, %s185
          %s187 = smul.u32 2, %s13
        $region28: #{forward.2} parent=23 // pred_fallthru
          _
      $region24: #{forward.2} parent=5 // pred_fallthru
        _
      %p188 = scmp.le.s32.totalorder 1, %s13
      %p189 = scmp.lt.s32.totalorder %s13, 3
      %p190 = pnand %p188, %p189
      %p191 = pneg %p190
      // Predicated region
      $region29: #{forward.2} parent=5 // pred_check
        _
      $region30: #{forward.2} parent=5 // pred_check_branch
        %193 = sbr.rel (%p190) target = $region32
      $region31: #{forward.2} parent=5 // pred_region
        %s194 = ssub.s32 %s13, 1
        // Predicated region
        $region33: #{forward.2} parent=31 // pred_check
          %p195 = pneg %p60
        $region34: #{forward.2} parent=31 // pred_check_branch
          %197 = sbr.rel (%p195) target = $region36
        $region35: #{forward.2} parent=31 // pred_region
          %198 = dma.done [#allocation3], 6144
        $region36: #{forward.2} parent=31 // pred_fallthru
          _
        // Predicated region
        $region37: #{forward.2} parent=31 // pred_check
          %p199 = pneg %p81
        $region38: #{forward.2} parent=31 // pred_check_branch
          %201 = sbr.rel (%p199) target = $region40
        $region39: #{forward.2} parent=31 // pred_region
          %202 = dma.done [#allocation5], 6144
        $region40: #{forward.2} parent=31 // pred_fallthru
          _
        %s203 = smul.u32 2, %s18
        %p204 = scmp.lt.s32.totalorder %s203, 3
        %s205 = scalar_select %p204, %s203, 3
        %s206 = smul.addr %s205, 2
        %s207 = smul.addr %s206, 4
        %s208 = scalar_lea.vmem %s0, %s207
        %p209 = pneg %p39
        %p210 = pneg %p36
        %p211 = pneg %p60
        %p212 = pneg %p57
        %p213 = pneg %p81
        %p214 = pneg %p78
        %p215 = pneg %p107
        %p216 = pneg %p104
        %s217 = smul.u32 2, %s18
        %p218 = scmp.lt.s32.totalorder %s217, 3
        %s219 = scalar_select %p218, %s217, 3
        %s220 = smul.addr %s219, 8
        %s221 = scalar_lea.vmem %s3, %s220
        %p222 = pneg %p133
        %p223 = pneg %p130
        %p224 = scmp.lt.s32.totalorder %s18, 1
        %s225 = scalar_select %p224, %s18, 1
        %s226 = scalar_lea.vmem %s4, %s225
        %s227 = smul.u32 2, %s18
        %p228 = scmp.lt.s32.totalorder %s227, 3
        %s229 = scalar_select %p228, %s227, 3
        %s230 = smul.addr %s229, 2
        %s231 = smul.addr %s230, 4
        %s232 = scalar_lea.vmem %s0, %s231
        %s233 = smul.u32 2, %s18
        %s234 = smul.u32 2, %s18
        %p235 = scmp.lt.s32.totalorder %s234, 3
        %s236 = scalar_select %p235, %s234, 3
        %s237 = smul.addr %s236, 8
        %s238 = scalar_lea.vmem %s3, %s237
        %s239 = smul.u32 2, %s18
        %p240 = scmp.lt.s32.totalorder %s18, 1
        %s241 = scalar_select %p240, %s18, 1
        %s242 = scalar_lea.vmem %s4, %s241
        %v244 = vld [vmem:[%s232] sm:$0xff]
        %v245 = vld [vmem:[%s232 + $0x8] sm:$0xff]
        %v246 = vld [vmem:[#allocation2] sm:$0xff]
        %v247 = vld [vmem:[#allocation2 + $0x8] sm:$0xf]
        %v248 = vld [vmem:[#allocation2 + $0xc] sm:$0xff]
        %v249 = vld [vmem:[#allocation2 + $0x14] sm:$0xf]
        %v250 = vld [vmem:[#allocation2 + $0x18] sm:$0xff]
        %v251 = vld [vmem:[#allocation2 + $0x20] sm:$0xf]
        %v252 = vld [vmem:[#allocation2 + $0x24] sm:$0xff]
        %v253 = vld [vmem:[#allocation2 + $0x2c] sm:$0xf]
        %v254 = vld [vmem:[#allocation2 + $0x30] sm:$0xff]
        %v255 = vld [vmem:[#allocation2 + $0x38] sm:$0xf]
        %v256 = vld [vmem:[#allocation2 + $0x3c] sm:$0xff]
        %v257 = vld [vmem:[#allocation2 + $0x44] sm:$0xf]
        %v258 = vld [vmem:[#allocation2 + $0x48] sm:$0xff]
        %v259 = vld [vmem:[#allocation2 + $0x50] sm:$0xf]
        %v260 = vld [vmem:[#allocation2 + $0x54] sm:$0xff]
        %v261 = vld [vmem:[#allocation2 + $0x5c] sm:$0xf]
        %v262 = vld [vmem:[#allocation2 + $0x60] sm:$0xff]
        %v263 = vld [vmem:[#allocation2 + $0x68] sm:$0xf]
        %v264 = vld [vmem:[#allocation2 + $0x6c] sm:$0xff]
        %v265 = vld [vmem:[#allocation2 + $0x74] sm:$0xf]
        %v266 = vld [vmem:[#allocation2 + $0x78] sm:$0xff]
        %v267 = vld [vmem:[#allocation2 + $0x80] sm:$0xf]
        %v268 = vld [vmem:[#allocation2 + $0x84] sm:$0xff]
        %v269 = vld [vmem:[#allocation2 + $0x8c] sm:$0xf]
        %v270 = vld [vmem:[#allocation2 + $0x90] sm:$0xff]
        %v271 = vld [vmem:[#allocation2 + $0x98] sm:$0xf]
        %v272 = vld [vmem:[#allocation2 + $0x9c] sm:$0xff]
        %v273 = vld [vmem:[#allocation2 + $0xa4] sm:$0xf]
        %v274 = vld [vmem:[#allocation2 + $0xa8] sm:$0xff]
        %v275 = vld [vmem:[#allocation2 + $0xb0] sm:$0xf]
        %v276 = vld [vmem:[#allocation2 + $0xb4] sm:$0xff]
        %v277 = vld [vmem:[#allocation2 + $0xbc] sm:$0xf]
        %v278 = vld [vmem:[#allocation2 + $0xc0] sm:$0xff]
        %v279 = vld [vmem:[#allocation2 + $0xc8] sm:$0xf]
        %v280 = vld [vmem:[#allocation2 + $0xcc] sm:$0xff]
        %v281 = vld [vmem:[#allocation2 + $0xd4] sm:$0xf]
        %v282 = vld [vmem:[#allocation2 + $0xd8] sm:$0xff]
        %v283 = vld [vmem:[#allocation2 + $0xe0] sm:$0xf]
        %v284 = vld [vmem:[#allocation2 + $0xe4] sm:$0xff]
        %v285 = vld [vmem:[#allocation2 + $0xec] sm:$0xf]
        %v286 = vld [vmem:[#allocation2 + $0xf0] sm:$0xff]
        %v287 = vld [vmem:[#allocation2 + $0xf8] sm:$0xf]
        %v288 = vld [vmem:[#allocation2 + $0xfc] sm:$0xff]
        %v289 = vld [vmem:[#allocation2 + $0x104] sm:$0xf]
        %v290 = vld [vmem:[#allocation2 + $0x108] sm:$0xff]
        %v291 = vld [vmem:[#allocation2 + $0x110] sm:$0xf]
        %v292 = vld [vmem:[#allocation2 + $0x114] sm:$0xff]
        %v293 = vld [vmem:[#allocation2 + $0x11c] sm:$0xf]
        %v294 = vld [vmem:[#allocation2 + $0x120] sm:$0xff]
        %v295 = vld [vmem:[#allocation2 + $0x128] sm:$0xf]
        %v296 = vld [vmem:[#allocation2 + $0x12c] sm:$0xff]
        %v297 = vld [vmem:[#allocation2 + $0x134] sm:$0xf]
        %v298 = vld [vmem:[#allocation2 + $0x138] sm:$0xff]
        %v299 = vld [vmem:[#allocation2 + $0x140] sm:$0xf]
        %v300 = vld [vmem:[#allocation2 + $0x144] sm:$0xff]
        %v301 = vld [vmem:[#allocation2 + $0x14c] sm:$0xf]
        %v302 = vld [vmem:[#allocation2 + $0x150] sm:$0xff]
        %v303 = vld [vmem:[#allocation2 + $0x158] sm:$0xf]
        %v304 = vld [vmem:[#allocation2 + $0x15c] sm:$0xff]
        %v305 = vld [vmem:[#allocation2 + $0x164] sm:$0xf]
        %v306 = vld [vmem:[#allocation2 + $0x168] sm:$0xff]
        %v307 = vld [vmem:[#allocation2 + $0x170] sm:$0xf]
        %v308 = vld [vmem:[#allocation2 + $0x174] sm:$0xff]
        %v309 = vld [vmem:[#allocation2 + $0x17c] sm:$0xf]
        %v312 = vunpack.c.l.b16 %v244
        %v313 = vunpack.c.h.b16 %v244
        %v314 = vunpack.c.l.b16 %v245
        %v315 = vunpack.c.h.b16 %v245
        %v316 = vpack.c.b16 %v314, %v312
        %v317 = vpack.c.b16 %v315, %v313
        %v384 = vunpack.c.l.b16 %v246
        %v385 = vunpack.c.h.b16 %v246
        %v386 = vunpack.c.l.b16 %v247
        %v387 = vunpack.c.l.b16 %v248
        %v388 = vunpack.c.h.b16 %v248
        %v389 = vunpack.c.l.b16 %v249
        %v390 = vunpack.c.l.b16 %v250
        %v391 = vunpack.c.h.b16 %v250
        %v392 = vunpack.c.l.b16 %v251
        %v393 = vunpack.c.l.b16 %v252
        %v394 = vunpack.c.h.b16 %v252
        %v395 = vunpack.c.l.b16 %v253
        %v396 = vunpack.c.l.b16 %v254
        %v397 = vunpack.c.h.b16 %v254
        %v398 = vunpack.c.l.b16 %v255
        %v399 = vunpack.c.l.b16 %v256
        %v400 = vunpack.c.h.b16 %v256
        %v401 = vunpack.c.l.b16 %v257
        %v402 = vunpack.c.l.b16 %v258
        %v403 = vunpack.c.h.b16 %v258
        %v404 = vunpack.c.l.b16 %v259
        %v405 = vunpack.c.l.b16 %v260
        %v406 = vunpack.c.h.b16 %v260
        %v407 = vunpack.c.l.b16 %v261
        %v408 = vunpack.c.l.b16 %v262
        %v409 = vunpack.c.h.b16 %v262
        %v410 = vunpack.c.l.b16 %v263
        %v411 = vunpack.c.l.b16 %v264
        %v412 = vunpack.c.h.b16 %v264
        %v413 = vunpack.c.l.b16 %v265
        %v414 = vunpack.c.l.b16 %v266
        %v415 = vunpack.c.h.b16 %v266
        %v416 = vunpack.c.l.b16 %v267
        %v417 = vunpack.c.l.b16 %v268
        %v418 = vunpack.c.h.b16 %v268
        %v419 = vunpack.c.l.b16 %v269
        %v420 = vunpack.c.l.b16 %v270
        %v421 = vunpack.c.h.b16 %v270
        %v422 = vunpack.c.l.b16 %v271
        %v423 = vunpack.c.l.b16 %v272
        %v424 = vunpack.c.h.b16 %v272
        %v425 = vunpack.c.l.b16 %v273
        %v426 = vunpack.c.l.b16 %v274
        %v427 = vunpack.c.h.b16 %v274
        %v428 = vunpack.c.l.b16 %v275
        %v429 = vunpack.c.l.b16 %v276
        %v430 = vunpack.c.h.b16 %v276
        %v431 = vunpack.c.l.b16 %v277
        %v432 = vunpack.c.l.b16 %v278
        %v433 = vunpack.c.h.b16 %v278
        %v434 = vunpack.c.l.b16 %v279
        %v435 = vunpack.c.l.b16 %v280
        %v436 = vunpack.c.h.b16 %v280
        %v437 = vunpack.c.l.b16 %v281
        %v438 = vunpack.c.l.b16 %v282
        %v439 = vunpack.c.h.b16 %v282
        %v440 = vunpack.c.l.b16 %v283
        %v441 = vunpack.c.l.b16 %v284
        %v442 = vunpack.c.h.b16 %v284
        %v443 = vunpack.c.l.b16 %v285
        %v444 = vunpack.c.l.b16 %v286
        %v445 = vunpack.c.h.b16 %v286
        %v446 = vunpack.c.l.b16 %v287
        %v447 = vunpack.c.l.b16 %v288
        %v448 = vunpack.c.h.b16 %v288
        %v449 = vunpack.c.l.b16 %v289
        %v450 = vunpack.c.l.b16 %v290
        %v451 = vunpack.c.h.b16 %v290
        %v452 = vunpack.c.l.b16 %v291
        %v453 = vunpack.c.l.b16 %v292
        %v454 = vunpack.c.h.b16 %v292
        %v455 = vunpack.c.l.b16 %v293
        %v456 = vunpack.c.l.b16 %v294
        %v457 = vunpack.c.h.b16 %v294
        %v458 = vunpack.c.l.b16 %v295
        %v459 = vunpack.c.l.b16 %v296
        %v460 = vunpack.c.h.b16 %v296
        %v461 = vunpack.c.l.b16 %v297
        %v462 = vunpack.c.l.b16 %v298
        %v463 = vunpack.c.h.b16 %v298
        %v464 = vunpack.c.l.b16 %v299
        %v465 = vunpack.c.l.b16 %v300
        %v466 = vunpack.c.h.b16 %v300
        %v467 = vunpack.c.l.b16 %v301
        %v468 = vunpack.c.l.b16 %v302
        %v469 = vunpack.c.h.b16 %v302
        %v470 = vunpack.c.l.b16 %v303
        %v471 = vunpack.c.l.b16 %v304
        %v472 = vunpack.c.h.b16 %v304
        %v473 = vunpack.c.l.b16 %v305
        %v474 = vunpack.c.l.b16 %v306
        %v475 = vunpack.c.h.b16 %v306
        %v476 = vunpack.c.l.b16 %v307
        %v477 = vunpack.c.l.b16 %v308
        %v478 = vunpack.c.h.b16 %v308
        %v479 = vunpack.c.l.b16 %v309
        %v480 = vpack.c.b16 %v387, %v384
        %v481 = vpack.c.b16 %v388, %v385
        %v482 = vpack.c.b16 %v389, %v386
        %v483 = vpack.c.b16 %v393, %v390
        %v484 = vpack.c.b16 %v394, %v391
        %v485 = vpack.c.b16 %v395, %v392
        %v486 = vpack.c.b16 %v399, %v396
        %v487 = vpack.c.b16 %v400, %v397
        %v488 = vpack.c.b16 %v401, %v398
        %v489 = vpack.c.b16 %v405, %v402
        %v490 = vpack.c.b16 %v406, %v403
        %v491 = vpack.c.b16 %v407, %v404
        %v492 = vpack.c.b16 %v411, %v408
        %v493 = vpack.c.b16 %v412, %v409
        %v494 = vpack.c.b16 %v413, %v410
        %v495 = vpack.c.b16 %v417, %v414
        %v496 = vpack.c.b16 %v418, %v415
        %v497 = vpack.c.b16 %v419, %v416
        %v498 = vpack.c.b16 %v423, %v420
        %v499 = vpack.c.b16 %v424, %v421
        %v500 = vpack.c.b16 %v425, %v422
        %v501 = vpack.c.b16 %v429, %v426
        %v502 = vpack.c.b16 %v430, %v427
        %v503 = vpack.c.b16 %v431, %v428
        %v504 = vpack.c.b16 %v435, %v432
        %v505 = vpack.c.b16 %v436, %v433
        %v506 = vpack.c.b16 %v437, %v434
        %v507 = vpack.c.b16 %v441, %v438
        %v508 = vpack.c.b16 %v442, %v439
        %v509 = vpack.c.b16 %v443, %v440
        %v510 = vpack.c.b16 %v447, %v444
        %v511 = vpack.c.b16 %v448, %v445
        %v512 = vpack.c.b16 %v449, %v446
        %v513 = vpack.c.b16 %v453, %v450
        %v514 = vpack.c.b16 %v454, %v451
        %v515 = vpack.c.b16 %v455, %v452
        %v516 = vpack.c.b16 %v459, %v456
        %v517 = vpack.c.b16 %v460, %v457
        %v518 = vpack.c.b16 %v461, %v458
        %v519 = vpack.c.b16 %v465, %v462
        %v520 = vpack.c.b16 %v466, %v463
        %v521 = vpack.c.b16 %v467, %v464
        %v522 = vpack.c.b16 %v471, %v468
        %v523 = vpack.c.b16 %v472, %v469
        %v524 = vpack.c.b16 %v473, %v470
        %v525 = vpack.c.b16 %v477, %v474
        %v526 = vpack.c.b16 %v478, %v475
        %v527 = vpack.c.b16 %v479, %v476
        %576 = vmatprep.subr.bf16.mxu0 %v502
        %577 = vmatpush1.bf16.msra.mxu0 %v501
        %578 = vmatprep.subr.bf16.mxu0 %v499
        %579 = vmatpush1.bf16.msra.mxu0 %v498
        %580 = vmatprep.subr.bf16.mxu0 %v496
        %581 = vmatpush1.bf16.msra.mxu0 %v495
        %582 = vmatprep.subr.bf16.mxu0 %v493
        %583 = vmatpush1.bf16.msra.mxu0 %v492
        %584 = vmatprep.subr.bf16.mxu0 %v490
        %585 = vmatpush1.bf16.msra.mxu0 %v489
        %586 = vmatprep.subr.bf16.mxu0 %v487
        %587 = vmatpush1.bf16.msra.mxu0 %v486
        %588 = vmatprep.subr.bf16.mxu0 %v484
        %589 = vmatpush1.bf16.msra.mxu0 %v483
        %590 = vmatprep.subr.bf16.mxu0 %v481
        %591 = vmatpush1.bf16.msra.mxu0 %v480
        %592 = vmatprep.subr.bf16.mxu0 %v526
        %593 = vmatpush2.bf16.msra.mxu0 %v525
        %594 = vmatprep.subr.bf16.mxu0 %v523
        %595 = vmatpush2.bf16.msra.mxu0 %v522
        %596 = vmatprep.subr.bf16.mxu0 %v520
        %597 = vmatpush2.bf16.msra.mxu0 %v519
        %598 = vmatprep.subr.bf16.mxu0 %v517
        %599 = vmatpush2.bf16.msra.mxu0 %v516
        %600 = vmatprep.subr.bf16.mxu0 %v514
        %601 = vmatpush2.bf16.msra.mxu0 %v513
        %602 = vmatprep.subr.bf16.mxu0 %v511
        %603 = vmatpush2.bf16.msra.mxu0 %v510
        %604 = vmatprep.subr.bf16.mxu0 %v508
        %605 = vmatpush2.bf16.msra.mxu0 %v507
        %606 = vmatprep.subr.bf16.mxu0 %v505
        %607 = vmatpush2.bf16.msra.mxu0 %v504
        %608 = vmatprep.mubr.bf16.mxu0 %v317
        %609 = vmatmul.mubr.bf16.gmra.mxu0 %v316
        %v610 = vpop.f32.mrf.mxu0
        %v611 = vadd.f32 0.0, %v610
        %v612 = vpop.f32.mrf.mxu0
        %v613 = vadd.f32 0.0, %v612
        %v614 = vpop.f32.mrf.mxu0
        %v615 = vadd.f32 0.0, %v614
        %v616 = vpop.f32.mrf.mxu0
        %v617 = vadd.f32 0.0, %v616
        %618 = vdwg.mxu0
        %619 = vmatprep.subr.bf16.mxu0 0
        %620 = vmatpush1.bf16.msra.mxu0 %v503
        %621 = vmatprep.subr.bf16.mxu0 0
        %622 = vmatpush1.bf16.msra.mxu0 %v500
        %623 = vmatprep.subr.bf16.mxu0 0
        %624 = vmatpush1.bf16.msra.mxu0 %v497
        %625 = vmatprep.subr.bf16.mxu0 0
        %626 = vmatpush1.bf16.msra.mxu0 %v494
        %627 = vmatprep.subr.bf16.mxu0 0
        %628 = vmatpush1.bf16.msra.mxu0 %v491
        %629 = vmatprep.subr.bf16.mxu0 0
        %630 = vmatpush1.bf16.msra.mxu0 %v488
        %631 = vmatprep.subr.bf16.mxu0 0
        %632 = vmatpush1.bf16.msra.mxu0 %v485
        %633 = vmatprep.subr.bf16.mxu0 0
        %634 = vmatpush1.bf16.msra.mxu0 %v482
        %635 = vmatprep.subr.bf16.mxu0 0
        %636 = vmatpush2.bf16.msra.mxu0 %v527
        %637 = vmatprep.subr.bf16.mxu0 0
        %638 = vmatpush2.bf16.msra.mxu0 %v524
        %639 = vmatprep.subr.bf16.mxu0 0
        %640 = vmatpush2.bf16.msra.mxu0 %v521
        %641 = vmatprep.subr.bf16.mxu0 0
        %642 = vmatpush2.bf16.msra.mxu0 %v518
        %643 = vmatprep.subr.bf16.mxu0 0
        %644 = vmatpush2.bf16.msra.mxu0 %v515
        %645 = vmatprep.subr.bf16.mxu0 0
        %646 = vmatpush2.bf16.msra.mxu0 %v512
        %647 = vmatprep.subr.bf16.mxu0 0
        %648 = vmatpush2.bf16.msra.mxu0 %v509
        %649 = vmatprep.subr.bf16.mxu0 0
        %650 = vmatpush2.bf16.msra.mxu0 %v506
        %651 = vmatprep.mubr.bf16.mxu0 %v317
        %652 = vmatmul.mubr.bf16.gmra.mxu0 %v316
        %v653 = vpop.f32.mrf.mxu0
        %v654 = vadd.f32 0.0, %v653
        %v655 = vpop.f32.mrf.mxu0
        %v656 = vpop.f32.mrf.mxu0
        %v657 = vadd.f32 0.0, %v656
        %v658 = vpop.f32.mrf.mxu0
        %659 = vdwg.mxu0
        %v660 = vmul.f32 %v611, %v611
        %v661 = vmul.f32 %v613, %v613
        %v662 = vmul.f32 %v654, %v654
        %v663 = vmul.f32 %v615, %v615
        %v664 = vmul.f32 %v617, %v617
        %v665 = vmul.f32 %v657, %v657
        %v666 = vld [vmem:[#allocation4] sm:$0xff]
        %v667 = vld [vmem:[#allocation4 + $0x8] sm:$0xff]
        %v668 = vld [vmem:[#allocation4 + $0x10] sm:$0xff]
        %v669 = vld [vmem:[#allocation4 + $0x18] sm:$0xff]
        %v670 = vld [vmem:[#allocation4 + $0x20] sm:$0xff]
        %v671 = vld [vmem:[#allocation4 + $0x28] sm:$0xff]
        %v672 = vld [vmem:[#allocation4 + $0x30] sm:$0xff]
        %v673 = vld [vmem:[#allocation4 + $0x38] sm:$0xff]
        %v674 = vld [vmem:[#allocation4 + $0x40] sm:$0xff]
        %v675 = vld [vmem:[#allocation4 + $0x48] sm:$0xff]
        %v676 = vld [vmem:[#allocation4 + $0x50] sm:$0xff]
        %v677 = vld [vmem:[#allocation4 + $0x58] sm:$0xff]
        %v678 = vld [vmem:[#allocation4 + $0x60] sm:$0xff]
        %v679 = vld [vmem:[#allocation4 + $0x68] sm:$0xff]
        %v680 = vld [vmem:[#allocation4 + $0x70] sm:$0xff]
        %v681 = vld [vmem:[#allocation4 + $0x78] sm:$0xff]
        %v682 = vld [vmem:[#allocation4 + $0x80] sm:$0xff]
        %v683 = vld [vmem:[#allocation4 + $0x88] sm:$0xff]
        %v684 = vld [vmem:[#allocation4 + $0x90] sm:$0xff]
        %v685 = vld [vmem:[#allocation4 + $0x98] sm:$0xff]
        %v686 = vld [vmem:[#allocation4 + $0xa0] sm:$0xff]
        %v687 = vld [vmem:[#allocation4 + $0xa8] sm:$0xff]
        %v688 = vld [vmem:[#allocation4 + $0xb0] sm:$0xff]
        %v689 = vld [vmem:[#allocation4 + $0xb8] sm:$0xff]
        %v690 = vld [vmem:[#allocation4 + $0xc0] sm:$0xff]
        %v691 = vld [vmem:[#allocation4 + $0xc8] sm:$0xff]
        %v692 = vld [vmem:[#allocation4 + $0xd0] sm:$0xff]
        %v693 = vld [vmem:[#allocation4 + $0xd8] sm:$0xff]
        %v694 = vld [vmem:[#allocation4 + $0xe0] sm:$0xff]
        %v695 = vld [vmem:[#allocation4 + $0xe8] sm:$0xff]
        %v696 = vld [vmem:[#allocation4 + $0xf0] sm:$0xff]
        %v697 = vld [vmem:[#allocation4 + $0xf8] sm:$0xff]
        %v698 = vld [vmem:[#allocation4 + $0x100] sm:$0xff]
        %v699 = vld [vmem:[#allocation4 + $0x108] sm:$0xff]
        %v700 = vld [vmem:[#allocation4 + $0x110] sm:$0xff]
        %v701 = vld [vmem:[#allocation4 + $0x118] sm:$0xff]
        %v702 = vld [vmem:[#allocation4 + $0x120] sm:$0xff]
        %v703 = vld [vmem:[#allocation4 + $0x128] sm:$0xff]
        %v704 = vld [vmem:[#allocation4 + $0x130] sm:$0xff]
        %v705 = vld [vmem:[#allocation4 + $0x138] sm:$0xff]
        %v706 = vld [vmem:[#allocation4 + $0x140] sm:$0xff]
        %v707 = vld [vmem:[#allocation4 + $0x148] sm:$0xff]
        %v708 = vld [vmem:[#allocation4 + $0x150] sm:$0xff]
        %v709 = vld [vmem:[#allocation4 + $0x158] sm:$0xff]
        %v710 = vld [vmem:[#allocation4 + $0x160] sm:$0xff]
        %v711 = vld [vmem:[#allocation4 + $0x168] sm:$0xff]
        %v712 = vld [vmem:[#allocation4 + $0x170] sm:$0xff]
        %v713 = vld [vmem:[#allocation4 + $0x178] sm:$0xff]
        %714 = vmatprep.subr.mxu0 0.0
        %715 = vmatpush1.msra.mxu0 %v681
        %716 = vmatprep.subr.mxu0 0.0
        %717 = vmatpush1.msra.mxu0 %v680
        %718 = vmatprep.subr.mxu0 0.0
        %719 = vmatpush1.msra.mxu0 %v679
        %720 = vmatprep.subr.mxu0 0.0
        %721 = vmatpush1.msra.mxu0 %v678
        %722 = vmatprep.subr.mxu0 0.0
        %723 = vmatpush1.msra.mxu0 %v677
        %724 = vmatprep.subr.mxu0 0.0
        %725 = vmatpush1.msra.mxu0 %v676
        %726 = vmatprep.subr.mxu0 0.0
        %727 = vmatpush1.msra.mxu0 %v675
        %728 = vmatprep.subr.mxu0 0.0
        %729 = vmatpush1.msra.mxu0 %v674
        %730 = vmatprep.subr.mxu0 0.0
        %731 = vmatpush1.msra.mxu0 %v673
        %732 = vmatprep.subr.mxu0 0.0
        %733 = vmatpush1.msra.mxu0 %v672
        %734 = vmatprep.subr.mxu0 0.0
        %735 = vmatpush1.msra.mxu0 %v671
        %736 = vmatprep.subr.mxu0 0.0
        %737 = vmatpush1.msra.mxu0 %v670
        %738 = vmatprep.subr.mxu0 0.0
        %739 = vmatpush1.msra.mxu0 %v669
        %740 = vmatprep.subr.mxu0 0.0
        %741 = vmatpush1.msra.mxu0 %v668
        %742 = vmatprep.subr.mxu0 0.0
        %743 = vmatpush1.msra.mxu0 %v667
        %744 = vmatprep.subr.mxu0 0.0
        %745 = vmatpush1.msra.mxu0 %v666
        %746 = vmatprep.subr.mxu0 0.0
        %747 = vmatpush2.msra.mxu0 %v697
        %748 = vmatprep.subr.mxu0 0.0
        %749 = vmatpush2.msra.mxu0 %v696
        %750 = vmatprep.subr.mxu0 0.0
        %751 = vmatpush2.msra.mxu0 %v695
        %752 = vmatprep.subr.mxu0 0.0
        %753 = vmatpush2.msra.mxu0 %v694
        %754 = vmatprep.subr.mxu0 0.0
        %755 = vmatpush2.msra.mxu0 %v693
        %756 = vmatprep.subr.mxu0 0.0
        %757 = vmatpush2.msra.mxu0 %v692
        %758 = vmatprep.subr.mxu0 0.0
        %759 = vmatpush2.msra.mxu0 %v691
        %760 = vmatprep.subr.mxu0 0.0
        %761 = vmatpush2.msra.mxu0 %v690
        %762 = vmatprep.subr.mxu0 0.0
        %763 = vmatpush2.msra.mxu0 %v689
        %764 = vmatprep.subr.mxu0 0.0
        %765 = vmatpush2.msra.mxu0 %v688
        %766 = vmatprep.subr.mxu0 0.0
        %767 = vmatpush2.msra.mxu0 %v687
        %768 = vmatprep.subr.mxu0 0.0
        %769 = vmatpush2.msra.mxu0 %v686
        %770 = vmatprep.subr.mxu0 0.0
        %771 = vmatpush2.msra.mxu0 %v685
        %772 = vmatprep.subr.mxu0 0.0
        %773 = vmatpush2.msra.mxu0 %v684
        %774 = vmatprep.subr.mxu0 0.0
        %775 = vmatpush2.msra.mxu0 %v683
        %776 = vmatprep.subr.mxu0 0.0
        %777 = vmatpush2.msra.mxu0 %v682
        %778 = vmatprep.mubr.f32.mxu0 %v661
        %779 = vmatmul.mubr.f32.gmra.mxu0 %v660
        %v780 = vpop.f32.mrf.mxu0
        %v781 = vadd.f32 0.0, %v780
        %v782 = vpop.f32.mrf.mxu0
        %783 = vmatprep.mubr.f32.mxu0 %v664
        %784 = vmatmul.mubr.f32.gmra.mxu0 %v663
        %v785 = vpop.f32.mrf.mxu0
        %v786 = vadd.f32 0.0, %v785
        %v787 = vpop.f32.mrf.mxu0
        %788 = vdwg.mxu0
        %789 = vmatprep.subr.mxu0 0.0
        %790 = vmatpush1.msra.mxu0 %v713
        %791 = vmatprep.subr.mxu0 0.0
        %792 = vmatpush1.msra.mxu0 %v712
        %793 = vmatprep.subr.mxu0 0.0
        %794 = vmatpush1.msra.mxu0 %v711
        %795 = vmatprep.subr.mxu0 0.0
        %796 = vmatpush1.msra.mxu0 %v710
        %797 = vmatprep.subr.mxu0 0.0
        %798 = vmatpush1.msra.mxu0 %v709
        %799 = vmatprep.subr.mxu0 0.0
        %800 = vmatpush1.msra.mxu0 %v708
        %801 = vmatprep.subr.mxu0 0.0
        %802 = vmatpush1.msra.mxu0 %v707
        %803 = vmatprep.subr.mxu0 0.0
        %804 = vmatpush1.msra.mxu0 %v706
        %805 = vmatprep.subr.mxu0 0.0
        %806 = vmatpush1.msra.mxu0 %v705
        %807 = vmatprep.subr.mxu0 0.0
        %808 = vmatpush1.msra.mxu0 %v704
        %809 = vmatprep.subr.mxu0 0.0
        %810 = vmatpush1.msra.mxu0 %v703
        %811 = vmatprep.subr.mxu0 0.0
        %812 = vmatpush1.msra.mxu0 %v702
        %813 = vmatprep.subr.mxu0 0.0
        %814 = vmatpush1.msra.mxu0 %v701
        %815 = vmatprep.subr.mxu0 0.0
        %816 = vmatpush1.msra.mxu0 %v700
        %817 = vmatprep.subr.mxu0 0.0
        %818 = vmatpush1.msra.mxu0 %v699
        %819 = vmatprep.subr.mxu0 0.0
        %820 = vmatpush1.msra.mxu0 %v698
        %821 = vmatprep.subr.mxu0 0.0
        %822 = vmatpush2.msra.mxu0 0.0
        %823 = vmatprep.subr.mxu0 0.0
        %824 = vmatpush2.msra.mxu0 0.0
        %825 = vmatprep.subr.mxu0 0.0
        %826 = vmatpush2.msra.mxu0 0.0
        %827 = vmatprep.subr.mxu0 0.0
        %828 = vmatpush2.msra.mxu0 0.0
        %829 = vmatprep.subr.mxu0 0.0
        %830 = vmatpush2.msra.mxu0 0.0
        %831 = vmatprep.subr.mxu0 0.0
        %832 = vmatpush2.msra.mxu0 0.0
        %833 = vmatprep.subr.mxu0 0.0
        %834 = vmatpush2.msra.mxu0 0.0
        %835 = vmatprep.subr.mxu0 0.0
        %836 = vmatpush2.msra.mxu0 0.0
        %837 = vmatprep.subr.mxu0 0.0
        %838 = vmatpush2.msra.mxu0 0.0
        %839 = vmatprep.subr.mxu0 0.0
        %840 = vmatpush2.msra.mxu0 0.0
        %841 = vmatprep.subr.mxu0 0.0
        %842 = vmatpush2.msra.mxu0 0.0
        %843 = vmatprep.subr.mxu0 0.0
        %844 = vmatpush2.msra.mxu0 0.0
        %845 = vmatprep.subr.mxu0 0.0
        %846 = vmatpush2.msra.mxu0 0.0
        %847 = vmatprep.subr.mxu0 0.0
        %848 = vmatpush2.msra.mxu0 0.0
        %849 = vmatprep.subr.mxu0 0.0
        %850 = vmatpush2.msra.mxu0 0.0
        %851 = vmatprep.subr.mxu0 0.0
        %852 = vmatpush2.msra.mxu0 0.0
        %853 = vmatprep.mubr.f32.mxu0 0.0
        %854 = vmatmul.mubr.f32.gmra.mxu0 %v662
        %v855 = vpop.f32.mrf.mxu0
        %v856 = vadd.f32 %v781, %v855
        %v857 = vpop.f32.mrf.mxu0
        %858 = vmatprep.mubr.f32.mxu0 0.0
        %859 = vmatmul.mubr.f32.gmra.mxu0 %v665
        %v860 = vpop.f32.mrf.mxu0
        %v861 = vadd.f32 %v786, %v860
        %v862 = vpop.f32.mrf.mxu0
        %863 = vdwg.mxu0
        %864 = vst [vmem:[%s238] sm:$0xff] %v856
        %865 = vst [vmem:[%s238 + $0x8] sm:$0xff] %v861
        %v866 = vmax.f32 %v856, %v861
        %v867 = vrot.slane %v866, 4
        %v868 = vmax.f32 %v866, %v867
        %v869 = vrot.slane %v868, 2
        %v870 = vmax.f32 %v868, %v869
        %v871 = vrot.slane %v870, 1
        %v872 = vmax.f32 %v870, %v871
        %873 = vst [vmem:[%s242] sm:$0x1] %v872
        %s874 = smul.u32 2, %s18
        %p875 = scmp.lt.s32.totalorder %s874, 3
        %s876 = scalar_select %p875, %s874, 3
        %s877 = smul.addr %s876, 8
        %s878 = scalar_lea.vmem %s3, %s877
        %p879 = scmp.lt.s32.totalorder %s18, 1
        %s880 = scalar_select %p879, %s18, 1
        %s881 = scalar_lea.vmem %s4, %s880
        // Predicated region
        $region41: #{forward.2} parent=31 // pred_check
          %p882 = pneg %p104
        $region42: #{forward.2} parent=31 // pred_check_branch
          %884 = sbr.rel (%p882) target = $region44
        $region43: #{forward.2} parent=31 // pred_region
          %s885 = smul.u32 2, %s18
        $region44: #{forward.2} parent=31 // pred_fallthru
          _
        // Predicated region
        $region45: #{forward.2} parent=31 // pred_check
          %p886 = pneg %p130
        $region46: #{forward.2} parent=31 // pred_check_branch
          %888 = sbr.rel (%p886) target = $region48
        $region47: #{forward.2} parent=31 // pred_region
          _
        $region48: #{forward.2} parent=31 // pred_fallthru
          _
      $region32: #{forward.2} parent=5 // pred_fallthru
        _
      %p889 = scmp.le.s32.totalorder 2, %s13
      // Predicated region
      $region49: #{forward.2} parent=5 // pred_check
        %p890 = pneg %p889
      $region50: #{forward.2} parent=5 // pred_check_branch
        %892 = sbr.rel (%p890) target = $region52
      $region51: #{forward.2} parent=5 // pred_region
        %s893 = ssub.s32 %s13, 2
        // Predicated region
        $region53: #{forward.2} parent=51 // pred_check
          %p894 = pneg %p110
        $region54: #{forward.2} parent=51 // pred_check_branch
          %896 = sbr.rel (%p894) target = $region56
        $region55: #{forward.2} parent=51 // pred_region
          %s897 = smul.u32 2, %s19
          %p898 = scmp.lt.s32.totalorder %s897, 3
          %s899 = scalar_select %p898, %s897, 3
          %s900 = smul.addr %s899, 8
          %s901 = scalar_lea.vmem %s3, %s900
        $region56: #{forward.2} parent=51 // pred_fallthru
          _
        // Predicated region
        $region57: #{forward.2} parent=51 // pred_check
          %p902 = pneg %p136
        $region58: #{forward.2} parent=51 // pred_check_branch
          %904 = sbr.rel (%p902) target = $region60
        $region59: #{forward.2} parent=51 // pred_region
          %p905 = scmp.lt.s32.totalorder %s19, 1
          %s906 = scalar_select %p905, %s19, 1
          %s907 = scalar_lea.vmem %s4, %s906
        $region60: #{forward.2} parent=51 // pred_fallthru
          _
      $region52: #{forward.2} parent=5 // pred_fallthru
        _
    $region6: #{forward.2} parent=1 // loop_footer
      %s17 = sadd.s32 1, %s13
    $region7: #{forward.2} parent=1 // loop_footer_branch
      %12 = sbr.rel target = $region3
    $region8: #{forward.2} parent=1 // loop_exit
      _
    %908 = vsyncpa [#allocation3], 1
    %s909 = scalar_lea.sflag [#allocation3], 1
    %910 = vsyncpa %s909, 1
    %911 = vsyncpa [#allocation5], 1

</llo_original>
